<compile_context>
chip_gen: v7x
topology: tpu7x:2x2x1
jax: 0.10.0
libtpu: 0.0.40
codegen_flags: <defaults>
</compile_context>

<pallas_src>
import functools

import jax
import jax.numpy as jnp
from jax import lax
from jax.experimental import pallas as pl
from jax.experimental.pallas import tpu as pltpu


def _lstm_step(gate_in, h, c, wh, H):
    """One LSTM step given the pre-computed input projection (x @ W_ih + b).

    PyTorch gate order: i, f, g, o.  Only the h @ W_hh dot remains on the
    serial chain.
    """
    gates = gate_in + jnp.dot(h, wh, preferred_element_type=jnp.float32)
    i = jax.nn.sigmoid(gates[:, 0:H])
    f = jax.nn.sigmoid(gates[:, H:2 * H])
    g = jnp.tanh(gates[:, 2 * H:3 * H])
    o = jax.nn.sigmoid(gates[:, 3 * H:4 * H])
    c_new = f * c + i * g
    h_new = o * jnp.tanh(c_new)
    return h_new, c_new


def pdf_organizer_kernel(emb_ref, wi_t_ref, wh_t_ref, b_t_ref,
                         num_x_ref, wi_n_ref, wh_n_ref, b_n_ref,
                         w_no_ref, b_no_ref,
                         table_ref, w_tab_ref, b_tab_ref,
                         idx_ref,          # SMEM (N,) int32
                         out_ref):
    T = emb_ref.shape[0]
    H = wh_t_ref.shape[0]
    N = num_x_ref.shape[0]

    # ---- text LSTM over the token-embedding sequence ----
    # Hoisted input projection (+ bias folded in): single [T,E]x[E,4H] matmul,
    # off the serial recurrence.
    wh_t = wh_t_ref[...]
    x_proj = (jnp.dot(emb_ref[...], wi_t_ref[...],
                      preferred_element_type=jnp.float32)
              + b_t_ref[...])                                      # [T, 4H]

    h = jnp.zeros((1, H), jnp.float32)
    c = jnp.zeros((1, H), jnp.float32)
    hs = []
    # T is tiny and static -> full unroll; hidden states stay in vregs.
    for t in range(T):
        h, c = _lstm_step(x_proj[t:t + 1, :], h, c, wh_t, H)
        hs.append(h)
    h_all = jnp.concatenate(hs, axis=0)                            # [T, H]

    # ---- gather hidden states at the nearest-token indices ----
    # Indices are SMEM scalars: per index, a cheap select + sublane reduce
    # (no one-hot MXU dot, no VMEM round-trip).
    iota_t = lax.broadcasted_iota(jnp.int32, (T, 1), 0)
    rows = []
    for n in range(N):
        sel = iota_t == idx_ref[n]                                 # [T, 1]
        rows.append(jnp.sum(jnp.where(sel, h_all, 0.0),
                            axis=0, keepdims=True))                # [1, H]
    text_out = jnp.concatenate(rows, axis=0)                       # [N, H]

    # ---- numerical LSTM over the extracted scalar values ----
    # input_size == 1, so the hoisted projection is a broadcast multiply.
    wh_n = wh_n_ref[...]
    num_proj = num_x_ref[...] * wi_n_ref[...] + b_n_ref[...]       # [N, 4H]
    h_n = jnp.zeros((1, H), jnp.float32)
    c_n = jnp.zeros((1, H), jnp.float32)
    for t in range(N):                                             # full unroll
        h_n, c_n = _lstm_step(num_proj[t:t + 1, :], h_n, c_n, wh_n, H)

    numerical_out = (jnp.dot(h_n, w_no_ref[...],
                             preferred_element_type=jnp.float32)
                     + b_no_ref[...])                              # [1, O]

    # ---- table linear ----
    table_out = (jnp.dot(table_ref[...], w_tab_ref[...],
                         preferred_element_type=jnp.float32)
                 + b_tab_ref[...])                                 # [R, O]

    # ---- single store of the concatenated result (one write, not three
    #      overlapping masked read-modify-writes into the same tile) ----
    out_ref[...] = jnp.concatenate([text_out, numerical_out, table_out],
                                   axis=0)


def pdf_organizer_forward(params, token_ids, num_values, num_idx, table):
    """Glue: embedding lookup in plain JAX, everything else in the kernel."""
    emb_x = jnp.take(params["embedding"], token_ids, axis=0)        # [T, E]
    N = num_values.shape[0]
    R = table.shape[0]
    O = params["w_no"].shape[1]

    vmem = pl.BlockSpec(memory_space=pltpu.MemorySpace.VMEM)
    smem = pl.BlockSpec(memory_space=pltpu.MemorySpace.SMEM)

    out = pl.pallas_call(
        pdf_organizer_kernel,
        out_shape=jax.ShapeDtypeStruct((N + 1 + R, O), jnp.float32),
        in_specs=[vmem] * 13 + [smem],
        out_specs=vmem,
    )(emb_x,
      params["wi_t"], params["wh_t"], params["b_t"],
      num_values,
      params["wi_n"], params["wh_n"], params["b_n"],
      params["w_no"], params["b_no"],
      table, params["w_tab"], params["b_tab"],
      num_idx.reshape(-1).astype(jnp.int32))
    return out


def pdf_organizer_reference(params, token_ids, num_values, num_idx, table):
    """Pure-JAX reference for correctness checking (same math grouping)."""
    H = params["wh_t"].shape[0]
    emb_x = jnp.take(params["embedding"], token_ids, axis=0)

    def run_lstm(x_proj, wh):
        def step(carry, g):
            h, c = carry
            h, c = _lstm_step(g[None, :], h, c, wh, H)
            return (h, c), h[0]
        init = (jnp.zeros((1, H), jnp.float32), jnp.zeros((1, H), jnp.float32))
        (h, _), hs = lax.scan(step, init, x_proj)
        return h, hs

    x_proj_t = emb_x @ params["wi_t"] + params["b_t"]
    _, text_hs = run_lstm(x_proj_t, params["wh_t"])
    text_out = text_hs[num_idx.reshape(-1)]

    x_proj_n = num_values @ params["wi_n"] + params["b_n"]
    h_num, _ = run_lstm(x_proj_n, params["wh_n"])
    numerical_out = h_num @ params["w_no"] + params["b_no"]
    table_out = table @ params["w_tab"] + params["b_tab"]
    return jnp.concatenate([text_out, numerical_out, table_out], axis=0)


def init_params(key, vocab, E, H, O):
    ks = jax.random.split(key, 12)
    s = 1.0 / jnp.sqrt(H)

    def u(k, shape):
        return jax.random.uniform(k, shape, jnp.float32, -s, s)

    return {
        "embedding": jax.random.normal(ks[0], (vocab, E), jnp.float32),
        # text LSTM (input_size=E)
        "wi_t": u(ks[1], (E, 4 * H)),
        "wh_t": u(ks[2], (H, 4 * H)),
        "b_t": u(ks[3], (1, 4 * H)),       # = b_ih + b_hh for real weights
        # numerical LSTM (input_size=1)
        "wi_n": u(ks[4], (1, 4 * H)),
        "wh_n": u(ks[5], (H, 4 * H)),
        "b_n": u(ks[6], (1, 4 * H)),       # = b_ih + b_hh for real weights
        # numerical_output: Linear(H, O)
        "w_no": u(ks[7], (H, O)),
        "b_no": u(ks[8], (1, O)),
        # table_output: Linear(10, O)
        "w_tab": u(ks[9], (10, O)),
        "b_tab": u(ks[10], (1, O)),
    }


if __name__ == "__main__":
    # TODO(synk): regex number extraction, word_tokenize, pandas CSV read and
    # nearest-token matching are host-side string ops with no Pallas
    # equivalent; the kernel consumes their (synthetic) tokenized outputs.
    E, H, O = 16, 32, 32      # embedding_dim, hidden_dim, output_dim (H == O)
    VOCAB = 10000
    T, N, R = 8, 4, 6         # tokens, extracted numbers, table rows

    key = jax.random.PRNGKey(0)
    k_param, k_tok, k_num, k_idx, k_tab = jax.random.split(key, 5)

    params = init_params(k_param, VOCAB, E, H, O)
    token_ids = jax.random.randint(k_tok, (T,), 0, VOCAB, jnp.int32)
    num_values = jax.random.uniform(k_num, (N, 1), jnp.float32, 0.0, 100.0)
    num_idx = jax.random.randint(k_idx, (N,), 0, T, jnp.int32)
    table = jax.random.normal(k_tab, (R, 10), jnp.float32)

    fwd = jax.jit(functools.partial(pdf_organizer_forward, params))
    out = fwd(token_ids, num_values, num_idx, table)
    jax.block_until_ready(out)

    ref = pdf_organizer_reference(params, token_ids, num_values, num_idx, table)
    assert out.shape == (N + 1 + R, O)
    assert jnp.allclose(out, ref, rtol=1e-3, atol=1e-3), "mismatch vs reference"

    print("KERNEL_OK")
</pallas_src>

<mosaic_0001>
module attributes {stable_mosaic.version = 11 : i64} {
  func.func @pdf_organizer_kernel(%arg0: memref<8x16xf32, #tpu.memory_space<vmem>>, %arg1: memref<16x128xf32, #tpu.memory_space<vmem>>, %arg2: memref<32x128xf32, #tpu.memory_space<vmem>>, %arg3: memref<1x128xf32, #tpu.memory_space<vmem>>, %arg4: memref<4x1xf32, #tpu.memory_space<vmem>>, %arg5: memref<1x128xf32, #tpu.memory_space<vmem>>, %arg6: memref<32x128xf32, #tpu.memory_space<vmem>>, %arg7: memref<1x128xf32, #tpu.memory_space<vmem>>, %arg8: memref<32x32xf32, #tpu.memory_space<vmem>>, %arg9: memref<1x32xf32, #tpu.memory_space<vmem>>, %arg10: memref<6x10xf32, #tpu.memory_space<vmem>>, %arg11: memref<10x32xf32, #tpu.memory_space<vmem>>, %arg12: memref<1x32xf32, #tpu.memory_space<vmem>>, %arg13: memref<4xi32, #tpu.memory_space<smem>>, %arg14: memref<11x32xf32, #tpu.memory_space<vmem>>) attributes {dimension_semantics = [], scalar_prefetch = 0 : i64, scratch_operands = 0 : i64, tpu.core_type = #tpu.core_type<tc>} {
    %c0 = arith.constant 0 : index
    %c0_0 = arith.constant 0 : index
    %0 = vector.load %arg2[%c0, %c0_0] : memref<32x128xf32, #tpu.memory_space<vmem>>, vector<32x128xf32>
    %c0_1 = arith.constant 0 : index
    %c0_2 = arith.constant 0 : index
    %1 = vector.load %arg0[%c0_1, %c0_2] : memref<8x16xf32, #tpu.memory_space<vmem>>, vector<8x16xf32>
    %c0_3 = arith.constant 0 : index
    %c0_4 = arith.constant 0 : index
    %2 = vector.load %arg1[%c0_3, %c0_4] : memref<16x128xf32, #tpu.memory_space<vmem>>, vector<16x128xf32>
    %cst = arith.constant dense<0.000000e+00> : vector<8x128xf32>
    %3 = tpu.matmul %1, %2, %cst {dimension_numbers = #tpu.dot_dimension_numbers<[1], [0], [0], [1], [0, 0, 1, 1], [], []>} : vector<8x16xf32>, vector<16x128xf32>, vector<8x128xf32> -> vector<8x128xf32>
    %c0_5 = arith.constant 0 : index
    %c0_6 = arith.constant 0 : index
    %4 = vector.load %arg3[%c0_5, %c0_6] : memref<1x128xf32, #tpu.memory_space<vmem>>, vector<1x128xf32>
    %5 = vector.broadcast %4 : vector<1x128xf32> to vector<8x128xf32>
    %6 = arith.addf %3, %5 : vector<8x128xf32>
    %cst_7 = arith.constant 0.000000e+00 : f32
    %7 = vector.broadcast %cst_7 : f32 to vector<1x32xf32>
    %cst_8 = arith.constant 0.000000e+00 : f32
    %8 = vector.broadcast %cst_8 : f32 to vector<1x32xf32>
    %9 = vector.extract_strided_slice %6 {offsets = [0, 0], sizes = [1, 128], strides = [1, 1]} : vector<8x128xf32> to vector<1x128xf32>
    %cst_9 = arith.constant dense<0.000000e+00> : vector<1x128xf32>
    %10 = tpu.matmul %7, %0, %cst_9 {dimension_numbers = #tpu.dot_dimension_numbers<[1], [0], [0], [1], [0, 0, 1, 1], [], []>} : vector<1x32xf32>, vector<32x128xf32>, vector<1x128xf32> -> vector<1x128xf32>
    %11 = arith.addf %9, %10 : vector<1x128xf32>
    %12 = vector.extract_strided_slice %11 {offsets = [0, 0], sizes = [1, 32], strides = [1, 1]} : vector<1x128xf32> to vector<1x32xf32>
    %13 = arith.negf %12 : vector<1x32xf32>
    %14 = math.exp %13 : vector<1x32xf32>
    %cst_10 = arith.constant 1.000000e+00 : f32
    %15 = vector.broadcast %cst_10 : f32 to vector<1x32xf32>
    %16 = arith.addf %15, %14 : vector<1x32xf32>
    %17 = arith.divf %15, %16 : vector<1x32xf32>
    %18 = vector.extract_strided_slice %11 {offsets = [0, 32], sizes = [1, 32], strides = [1, 1]} : vector<1x128xf32> to vector<1x32xf32>
    %19 = arith.negf %18 : vector<1x32xf32>
    %20 = math.exp %19 : vector<1x32xf32>
    %cst_11 = arith.constant 1.000000e+00 : f32
    %21 = vector.broadcast %cst_11 : f32 to vector<1x32xf32>
    %22 = arith.addf %21, %20 : vector<1x32xf32>
    %23 = arith.divf %21, %22 : vector<1x32xf32>
    %24 = vector.extract_strided_slice %11 {offsets = [0, 64], sizes = [1, 32], strides = [1, 1]} : vector<1x128xf32> to vector<1x32xf32>
    %25 = math.tanh %24 : vector<1x32xf32>
    %26 = vector.extract_strided_slice %11 {offsets = [0, 96], sizes = [1, 32], strides = [1, 1]} : vector<1x128xf32> to vector<1x32xf32>
    %27 = arith.negf %26 : vector<1x32xf32>
    %28 = math.exp %27 : vector<1x32xf32>
    %cst_12 = arith.constant 1.000000e+00 : f32
    %29 = vector.broadcast %cst_12 : f32 to vector<1x32xf32>
    %30 = arith.addf %29, %28 : vector<1x32xf32>
    %31 = arith.divf %29, %30 : vector<1x32xf32>
    %32 = arith.mulf %23, %8 : vector<1x32xf32>
    %33 = arith.mulf %17, %25 : vector<1x32xf32>
    %34 = arith.addf %32, %33 : vector<1x32xf32>
    %35 = math.tanh %34 : vector<1x32xf32>
    %36 = arith.mulf %31, %35 : vector<1x32xf32>
    %37 = vector.extract_strided_slice %6 {offsets = [1, 0], sizes = [1, 128], strides = [1, 1]} : vector<8x128xf32> to vector<1x128xf32>
    %cst_13 = arith.constant dense<0.000000e+00> : vector<1x128xf32>
    %38 = tpu.matmul %36, %0, %cst_13 {dimension_numbers = #tpu.dot_dimension_numbers<[1], [0], [0], [1], [0, 0, 1, 1], [], []>} : vector<1x32xf32>, vector<32x128xf32>, vector<1x128xf32> -> vector<1x128xf32>
    %39 = arith.addf %37, %38 : vector<1x128xf32>
    %40 = vector.extract_strided_slice %39 {offsets = [0, 0], sizes = [1, 32], strides = [1, 1]} : vector<1x128xf32> to vector<1x32xf32>
    %41 = arith.negf %40 : vector<1x32xf32>
    %42 = math.exp %41 : vector<1x32xf32>
    %cst_14 = arith.constant 1.000000e+00 : f32
    %43 = vector.broadcast %cst_14 : f32 to vector<1x32xf32>
    %44 = arith.addf %43, %42 : vector<1x32xf32>
    %45 = arith.divf %43, %44 : vector<1x32xf32>
    %46 = vector.extract_strided_slice %39 {offsets = [0, 32], sizes = [1, 32], strides = [1, 1]} : vector<1x128xf32> to vector<1x32xf32>
    %47 = arith.negf %46 : vector<1x32xf32>
    %48 = math.exp %47 : vector<1x32xf32>
    %cst_15 = arith.constant 1.000000e+00 : f32
    %49 = vector.broadcast %cst_15 : f32 to vector<1x32xf32>
    %50 = arith.addf %49, %48 : vector<1x32xf32>
    %51 = arith.divf %49, %50 : vector<1x32xf32>
    %52 = vector.extract_strided_slice %39 {offsets = [0, 64], sizes = [1, 32], strides = [1, 1]} : vector<1x128xf32> to vector<1x32xf32>
    %53 = math.tanh %52 : vector<1x32xf32>
    %54 = vector.extract_strided_slice %39 {offsets = [0, 96], sizes = [1, 32], strides = [1, 1]} : vector<1x128xf32> to vector<1x32xf32>
    %55 = arith.negf %54 : vector<1x32xf32>
    %56 = math.exp %55 : vector<1x32xf32>
    %cst_16 = arith.constant 1.000000e+00 : f32
    %57 = vector.broadcast %cst_16 : f32 to vector<1x32xf32>
    %58 = arith.addf %57, %56 : vector<1x32xf32>
    %59 = arith.divf %57, %58 : vector<1x32xf32>
    %60 = arith.mulf %51, %34 : vector<1x32xf32>
    %61 = arith.mulf %45, %53 : vector<1x32xf32>
    %62 = arith.addf %60, %61 : vector<1x32xf32>
    %63 = math.tanh %62 : vector<1x32xf32>
    %64 = arith.mulf %59, %63 : vector<1x32xf32>
    %65 = vector.extract_strided_slice %6 {offsets = [2, 0], sizes = [1, 128], strides = [1, 1]} : vector<8x128xf32> to vector<1x128xf32>
    %cst_17 = arith.constant dense<0.000000e+00> : vector<1x128xf32>
    %66 = tpu.matmul %64, %0, %cst_17 {dimension_numbers = #tpu.dot_dimension_numbers<[1], [0], [0], [1], [0, 0, 1, 1], [], []>} : vector<1x32xf32>, vector<32x128xf32>, vector<1x128xf32> -> vector<1x128xf32>
    %67 = arith.addf %65, %66 : vector<1x128xf32>
    %68 = vector.extract_strided_slice %67 {offsets = [0, 0], sizes = [1, 32], strides = [1, 1]} : vector<1x128xf32> to vector<1x32xf32>
    %69 = arith.negf %68 : vector<1x32xf32>
    %70 = math.exp %69 : vector<1x32xf32>
    %cst_18 = arith.constant 1.000000e+00 : f32
    %71 = vector.broadcast %cst_18 : f32 to vector<1x32xf32>
    %72 = arith.addf %71, %70 : vector<1x32xf32>
    %73 = arith.divf %71, %72 : vector<1x32xf32>
    %74 = vector.extract_strided_slice %67 {offsets = [0, 32], sizes = [1, 32], strides = [1, 1]} : vector<1x128xf32> to vector<1x32xf32>
    %75 = arith.negf %74 : vector<1x32xf32>
    %76 = math.exp %75 : vector<1x32xf32>
    %cst_19 = arith.constant 1.000000e+00 : f32
    %77 = vector.broadcast %cst_19 : f32 to vector<1x32xf32>
    %78 = arith.addf %77, %76 : vector<1x32xf32>
    %79 = arith.divf %77, %78 : vector<1x32xf32>
    %80 = vector.extract_strided_slice %67 {offsets = [0, 64], sizes = [1, 32], strides = [1, 1]} : vector<1x128xf32> to vector<1x32xf32>
    %81 = math.tanh %80 : vector<1x32xf32>
    %82 = vector.extract_strided_slice %67 {offsets = [0, 96], sizes = [1, 32], strides = [1, 1]} : vector<1x128xf32> to vector<1x32xf32>
    %83 = arith.negf %82 : vector<1x32xf32>
    %84 = math.exp %83 : vector<1x32xf32>
    %cst_20 = arith.constant 1.000000e+00 : f32
    %85 = vector.broadcast %cst_20 : f32 to vector<1x32xf32>
    %86 = arith.addf %85, %84 : vector<1x32xf32>
    %87 = arith.divf %85, %86 : vector<1x32xf32>
    %88 = arith.mulf %79, %62 : vector<1x32xf32>
    %89 = arith.mulf %73, %81 : vector<1x32xf32>
    %90 = arith.addf %88, %89 : vector<1x32xf32>
    %91 = math.tanh %90 : vector<1x32xf32>
    %92 = arith.mulf %87, %91 : vector<1x32xf32>
    %93 = vector.extract_strided_slice %6 {offsets = [3, 0], sizes = [1, 128], strides = [1, 1]} : vector<8x128xf32> to vector<1x128xf32>
    %cst_21 = arith.constant dense<0.000000e+00> : vector<1x128xf32>
    %94 = tpu.matmul %92, %0, %cst_21 {dimension_numbers = #tpu.dot_dimension_numbers<[1], [0], [0], [1], [0, 0, 1, 1], [], []>} : vector<1x32xf32>, vector<32x128xf32>, vector<1x128xf32> -> vector<1x128xf32>
    %95 = arith.addf %93, %94 : vector<1x128xf32>
    %96 = vector.extract_strided_slice %95 {offsets = [0, 0], sizes = [1, 32], strides = [1, 1]} : vector<1x128xf32> to vector<1x32xf32>
    %97 = arith.negf %96 : vector<1x32xf32>
    %98 = math.exp %97 : vector<1x32xf32>
    %cst_22 = arith.constant 1.000000e+00 : f32
    %99 = vector.broadcast %cst_22 : f32 to vector<1x32xf32>
    %100 = arith.addf %99, %98 : vector<1x32xf32>
    %101 = arith.divf %99, %100 : vector<1x32xf32>
    %102 = vector.extract_strided_slice %95 {offsets = [0, 32], sizes = [1, 32], strides = [1, 1]} : vector<1x128xf32> to vector<1x32xf32>
    %103 = arith.negf %102 : vector<1x32xf32>
    %104 = math.exp %103 : vector<1x32xf32>
    %cst_23 = arith.constant 1.000000e+00 : f32
    %105 = vector.broadcast %cst_23 : f32 to vector<1x32xf32>
    %106 = arith.addf %105, %104 : vector<1x32xf32>
    %107 = arith.divf %105, %106 : vector<1x32xf32>
    %108 = vector.extract_strided_slice %95 {offsets = [0, 64], sizes = [1, 32], strides = [1, 1]} : vector<1x128xf32> to vector<1x32xf32>
    %109 = math.tanh %108 : vector<1x32xf32>
    %110 = vector.extract_strided_slice %95 {offsets = [0, 96], sizes = [1, 32], strides = [1, 1]} : vector<1x128xf32> to vector<1x32xf32>
    %111 = arith.negf %110 : vector<1x32xf32>
    %112 = math.exp %111 : vector<1x32xf32>
    %cst_24 = arith.constant 1.000000e+00 : f32
    %113 = vector.broadcast %cst_24 : f32 to vector<1x32xf32>
    %114 = arith.addf %113, %112 : vector<1x32xf32>
    %115 = arith.divf %113, %114 : vector<1x32xf32>
    %116 = arith.mulf %107, %90 : vector<1x32xf32>
    %117 = arith.mulf %101, %109 : vector<1x32xf32>
    %118 = arith.addf %116, %117 : vector<1x32xf32>
    %119 = math.tanh %118 : vector<1x32xf32>
    %120 = arith.mulf %115, %119 : vector<1x32xf32>
    %121 = vector.extract_strided_slice %6 {offsets = [4, 0], sizes = [1, 128], strides = [1, 1]} : vector<8x128xf32> to vector<1x128xf32>
    %cst_25 = arith.constant dense<0.000000e+00> : vector<1x128xf32>
    %122 = tpu.matmul %120, %0, %cst_25 {dimension_numbers = #tpu.dot_dimension_numbers<[1], [0], [0], [1], [0, 0, 1, 1], [], []>} : vector<1x32xf32>, vector<32x128xf32>, vector<1x128xf32> -> vector<1x128xf32>
    %123 = arith.addf %121, %122 : vector<1x128xf32>
    %124 = vector.extract_strided_slice %123 {offsets = [0, 0], sizes = [1, 32], strides = [1, 1]} : vector<1x128xf32> to vector<1x32xf32>
    %125 = arith.negf %124 : vector<1x32xf32>
    %126 = math.exp %125 : vector<1x32xf32>
    %cst_26 = arith.constant 1.000000e+00 : f32
    %127 = vector.broadcast %cst_26 : f32 to vector<1x32xf32>
    %128 = arith.addf %127, %126 : vector<1x32xf32>
    %129 = arith.divf %127, %128 : vector<1x32xf32>
    %130 = vector.extract_strided_slice %123 {offsets = [0, 32], sizes = [1, 32], strides = [1, 1]} : vector<1x128xf32> to vector<1x32xf32>
    %131 = arith.negf %130 : vector<1x32xf32>
    %132 = math.exp %131 : vector<1x32xf32>
    %cst_27 = arith.constant 1.000000e+00 : f32
    %133 = vector.broadcast %cst_27 : f32 to vector<1x32xf32>
    %134 = arith.addf %133, %132 : vector<1x32xf32>
    %135 = arith.divf %133, %134 : vector<1x32xf32>
    %136 = vector.extract_strided_slice %123 {offsets = [0, 64], sizes = [1, 32], strides = [1, 1]} : vector<1x128xf32> to vector<1x32xf32>
    %137 = math.tanh %136 : vector<1x32xf32>
    %138 = vector.extract_strided_slice %123 {offsets = [0, 96], sizes = [1, 32], strides = [1, 1]} : vector<1x128xf32> to vector<1x32xf32>
    %139 = arith.negf %138 : vector<1x32xf32>
    %140 = math.exp %139 : vector<1x32xf32>
    %cst_28 = arith.constant 1.000000e+00 : f32
    %141 = vector.broadcast %cst_28 : f32 to vector<1x32xf32>
    %142 = arith.addf %141, %140 : vector<1x32xf32>
    %143 = arith.divf %141, %142 : vector<1x32xf32>
    %144 = arith.mulf %135, %118 : vector<1x32xf32>
    %145 = arith.mulf %129, %137 : vector<1x32xf32>
    %146 = arith.addf %144, %145 : vector<1x32xf32>
    %147 = math.tanh %146 : vector<1x32xf32>
    %148 = arith.mulf %143, %147 : vector<1x32xf32>
    %149 = vector.extract_strided_slice %6 {offsets = [5, 0], sizes = [1, 128], strides = [1, 1]} : vector<8x128xf32> to vector<1x128xf32>
    %cst_29 = arith.constant dense<0.000000e+00> : vector<1x128xf32>
    %150 = tpu.matmul %148, %0, %cst_29 {dimension_numbers = #tpu.dot_dimension_numbers<[1], [0], [0], [1], [0, 0, 1, 1], [], []>} : vector<1x32xf32>, vector<32x128xf32>, vector<1x128xf32> -> vector<1x128xf32>
    %151 = arith.addf %149, %150 : vector<1x128xf32>
    %152 = vector.extract_strided_slice %151 {offsets = [0, 0], sizes = [1, 32], strides = [1, 1]} : vector<1x128xf32> to vector<1x32xf32>
    %153 = arith.negf %152 : vector<1x32xf32>
    %154 = math.exp %153 : vector<1x32xf32>
    %cst_30 = arith.constant 1.000000e+00 : f32
    %155 = vector.broadcast %cst_30 : f32 to vector<1x32xf32>
    %156 = arith.addf %155, %154 : vector<1x32xf32>
    %157 = arith.divf %155, %156 : vector<1x32xf32>
    %158 = vector.extract_strided_slice %151 {offsets = [0, 32], sizes = [1, 32], strides = [1, 1]} : vector<1x128xf32> to vector<1x32xf32>
    %159 = arith.negf %158 : vector<1x32xf32>
    %160 = math.exp %159 : vector<1x32xf32>
    %cst_31 = arith.constant 1.000000e+00 : f32
    %161 = vector.broadcast %cst_31 : f32 to vector<1x32xf32>
    %162 = arith.addf %161, %160 : vector<1x32xf32>
    %163 = arith.divf %161, %162 : vector<1x32xf32>
    %164 = vector.extract_strided_slice %151 {offsets = [0, 64], sizes = [1, 32], strides = [1, 1]} : vector<1x128xf32> to vector<1x32xf32>
    %165 = math.tanh %164 : vector<1x32xf32>
    %166 = vector.extract_strided_slice %151 {offsets = [0, 96], sizes = [1, 32], strides = [1, 1]} : vector<1x128xf32> to vector<1x32xf32>
    %167 = arith.negf %166 : vector<1x32xf32>
    %168 = math.exp %167 : vector<1x32xf32>
    %cst_32 = arith.constant 1.000000e+00 : f32
    %169 = vector.broadcast %cst_32 : f32 to vector<1x32xf32>
    %170 = arith.addf %169, %168 : vector<1x32xf32>
    %171 = arith.divf %169, %170 : vector<1x32xf32>
    %172 = arith.mulf %163, %146 : vector<1x32xf32>
    %173 = arith.mulf %157, %165 : vector<1x32xf32>
    %174 = arith.addf %172, %173 : vector<1x32xf32>
    %175 = math.tanh %174 : vector<1x32xf32>
    %176 = arith.mulf %171, %175 : vector<1x32xf32>
    %177 = vector.extract_strided_slice %6 {offsets = [6, 0], sizes = [1, 128], strides = [1, 1]} : vector<8x128xf32> to vector<1x128xf32>
    %cst_33 = arith.constant dense<0.000000e+00> : vector<1x128xf32>
    %178 = tpu.matmul %176, %0, %cst_33 {dimension_numbers = #tpu.dot_dimension_numbers<[1], [0], [0], [1], [0, 0, 1, 1], [], []>} : vector<1x32xf32>, vector<32x128xf32>, vector<1x128xf32> -> vector<1x128xf32>
    %179 = arith.addf %177, %178 : vector<1x128xf32>
    %180 = vector.extract_strided_slice %179 {offsets = [0, 0], sizes = [1, 32], strides = [1, 1]} : vector<1x128xf32> to vector<1x32xf32>
    %181 = arith.negf %180 : vector<1x32xf32>
    %182 = math.exp %181 : vector<1x32xf32>
    %cst_34 = arith.constant 1.000000e+00 : f32
    %183 = vector.broadcast %cst_34 : f32 to vector<1x32xf32>
    %184 = arith.addf %183, %182 : vector<1x32xf32>
    %185 = arith.divf %183, %184 : vector<1x32xf32>
    %186 = vector.extract_strided_slice %179 {offsets = [0, 32], sizes = [1, 32], strides = [1, 1]} : vector<1x128xf32> to vector<1x32xf32>
    %187 = arith.negf %186 : vector<1x32xf32>
    %188 = math.exp %187 : vector<1x32xf32>
    %cst_35 = arith.constant 1.000000e+00 : f32
    %189 = vector.broadcast %cst_35 : f32 to vector<1x32xf32>
    %190 = arith.addf %189, %188 : vector<1x32xf32>
    %191 = arith.divf %189, %190 : vector<1x32xf32>
    %192 = vector.extract_strided_slice %179 {offsets = [0, 64], sizes = [1, 32], strides = [1, 1]} : vector<1x128xf32> to vector<1x32xf32>
    %193 = math.tanh %192 : vector<1x32xf32>
    %194 = vector.extract_strided_slice %179 {offsets = [0, 96], sizes = [1, 32], strides = [1, 1]} : vector<1x128xf32> to vector<1x32xf32>
    %195 = arith.negf %194 : vector<1x32xf32>
    %196 = math.exp %195 : vector<1x32xf32>
    %cst_36 = arith.constant 1.000000e+00 : f32
    %197 = vector.broadcast %cst_36 : f32 to vector<1x32xf32>
    %198 = arith.addf %197, %196 : vector<1x32xf32>
    %199 = arith.divf %197, %198 : vector<1x32xf32>
    %200 = arith.mulf %191, %174 : vector<1x32xf32>
    %201 = arith.mulf %185, %193 : vector<1x32xf32>
    %202 = arith.addf %200, %201 : vector<1x32xf32>
    %203 = math.tanh %202 : vector<1x32xf32>
    %204 = arith.mulf %199, %203 : vector<1x32xf32>
    %205 = vector.extract_strided_slice %6 {offsets = [7, 0], sizes = [1, 128], strides = [1, 1]} : vector<8x128xf32> to vector<1x128xf32>
    %cst_37 = arith.constant dense<0.000000e+00> : vector<1x128xf32>
    %206 = tpu.matmul %204, %0, %cst_37 {dimension_numbers = #tpu.dot_dimension_numbers<[1], [0], [0], [1], [0, 0, 1, 1], [], []>} : vector<1x32xf32>, vector<32x128xf32>, vector<1x128xf32> -> vector<1x128xf32>
    %207 = arith.addf %205, %206 : vector<1x128xf32>
    %208 = vector.extract_strided_slice %207 {offsets = [0, 0], sizes = [1, 32], strides = [1, 1]} : vector<1x128xf32> to vector<1x32xf32>
    %209 = arith.negf %208 : vector<1x32xf32>
    %210 = math.exp %209 : vector<1x32xf32>
    %cst_38 = arith.constant 1.000000e+00 : f32
    %211 = vector.broadcast %cst_38 : f32 to vector<1x32xf32>
    %212 = arith.addf %211, %210 : vector<1x32xf32>
    %213 = arith.divf %211, %212 : vector<1x32xf32>
    %214 = vector.extract_strided_slice %207 {offsets = [0, 32], sizes = [1, 32], strides = [1, 1]} : vector<1x128xf32> to vector<1x32xf32>
    %215 = arith.negf %214 : vector<1x32xf32>
    %216 = math.exp %215 : vector<1x32xf32>
    %cst_39 = arith.constant 1.000000e+00 : f32
    %217 = vector.broadcast %cst_39 : f32 to vector<1x32xf32>
    %218 = arith.addf %217, %216 : vector<1x32xf32>
    %219 = arith.divf %217, %218 : vector<1x32xf32>
    %220 = vector.extract_strided_slice %207 {offsets = [0, 64], sizes = [1, 32], strides = [1, 1]} : vector<1x128xf32> to vector<1x32xf32>
    %221 = math.tanh %220 : vector<1x32xf32>
    %222 = vector.extract_strided_slice %207 {offsets = [0, 96], sizes = [1, 32], strides = [1, 1]} : vector<1x128xf32> to vector<1x32xf32>
    %223 = arith.negf %222 : vector<1x32xf32>
    %224 = math.exp %223 : vector<1x32xf32>
    %cst_40 = arith.constant 1.000000e+00 : f32
    %225 = vector.broadcast %cst_40 : f32 to vector<1x32xf32>
    %226 = arith.addf %225, %224 : vector<1x32xf32>
    %227 = arith.divf %225, %226 : vector<1x32xf32>
    %228 = arith.mulf %219, %202 : vector<1x32xf32>
    %229 = arith.mulf %213, %221 : vector<1x32xf32>
    %230 = arith.addf %228, %229 : vector<1x32xf32>
    %231 = math.tanh %230 : vector<1x32xf32>
    %232 = arith.mulf %227, %231 : vector<1x32xf32>
    %233 = tpu.concatenate %36, %64, %92, %120, %148, %176, %204, %232 in 0 : vector<1x32xf32>, vector<1x32xf32>, vector<1x32xf32>, vector<1x32xf32>, vector<1x32xf32>, vector<1x32xf32>, vector<1x32xf32>, vector<1x32xf32> -> vector<8x32xf32>
    %234 = tpu.iota {dimensions = array<i32: 0>} : vector<8x1xi32>
    %c0_41 = arith.constant 0 : index
    %235 = memref.load %arg13[%c0_41] : memref<4xi32, #tpu.memory_space<smem>>
    %236 = vector.broadcast %235 : i32 to vector<8x1xi32>
    %237 = arith.cmpi eq, %234, %236 : vector<8x1xi32>
    %cst_42 = arith.constant 0.000000e+00 : f32
    %238 = vector.shape_cast %237 : vector<8x1xi1> to vector<8x1xi1>
    %239 = vector.broadcast %238 : vector<8x1xi1> to vector<8x32xi1>
    %240 = vector.broadcast %cst_42 : f32 to vector<8x32xf32>
    %241 = arith.select %239, %233, %240 : vector<8x32xi1>, vector<8x32xf32>
    %cst_43 = arith.constant dense<0.000000e+00> : vector<32xf32>
    %242 = vector.multi_reduction <add>, %241, %cst_43 [0] : vector<8x32xf32> to vector<32xf32>
    %243 = vector.shape_cast %242 : vector<32xf32> to vector<1x32xf32>
    %c1 = arith.constant 1 : index
    %244 = memref.load %arg13[%c1] : memref<4xi32, #tpu.memory_space<smem>>
    %245 = vector.broadcast %244 : i32 to vector<8x1xi32>
    %246 = arith.cmpi eq, %234, %245 : vector<8x1xi32>
    %cst_44 = arith.constant 0.000000e+00 : f32
    %247 = vector.shape_cast %246 : vector<8x1xi1> to vector<8x1xi1>
    %248 = vector.broadcast %247 : vector<8x1xi1> to vector<8x32xi1>
    %249 = vector.broadcast %cst_44 : f32 to vector<8x32xf32>
    %250 = arith.select %248, %233, %249 : vector<8x32xi1>, vector<8x32xf32>
    %cst_45 = arith.constant dense<0.000000e+00> : vector<32xf32>
    %251 = vector.multi_reduction <add>, %250, %cst_45 [0] : vector<8x32xf32> to vector<32xf32>
    %252 = vector.shape_cast %251 : vector<32xf32> to vector<1x32xf32>
    %c2 = arith.constant 2 : index
    %253 = memref.load %arg13[%c2] : memref<4xi32, #tpu.memory_space<smem>>
    %254 = vector.broadcast %253 : i32 to vector<8x1xi32>
    %255 = arith.cmpi eq, %234, %254 : vector<8x1xi32>
    %cst_46 = arith.constant 0.000000e+00 : f32
    %256 = vector.shape_cast %255 : vector<8x1xi1> to vector<8x1xi1>
    %257 = vector.broadcast %256 : vector<8x1xi1> to vector<8x32xi1>
    %258 = vector.broadcast %cst_46 : f32 to vector<8x32xf32>
    %259 = arith.select %257, %233, %258 : vector<8x32xi1>, vector<8x32xf32>
    %cst_47 = arith.constant dense<0.000000e+00> : vector<32xf32>
    %260 = vector.multi_reduction <add>, %259, %cst_47 [0] : vector<8x32xf32> to vector<32xf32>
    %261 = vector.shape_cast %260 : vector<32xf32> to vector<1x32xf32>
    %c3 = arith.constant 3 : index
    %262 = memref.load %arg13[%c3] : memref<4xi32, #tpu.memory_space<smem>>
    %263 = vector.broadcast %262 : i32 to vector<8x1xi32>
    %264 = arith.cmpi eq, %234, %263 : vector<8x1xi32>
    %cst_48 = arith.constant 0.000000e+00 : f32
    %265 = vector.shape_cast %264 : vector<8x1xi1> to vector<8x1xi1>
    %266 = vector.broadcast %265 : vector<8x1xi1> to vector<8x32xi1>
    %267 = vector.broadcast %cst_48 : f32 to vector<8x32xf32>
    %268 = arith.select %266, %233, %267 : vector<8x32xi1>, vector<8x32xf32>
    %cst_49 = arith.constant dense<0.000000e+00> : vector<32xf32>
    %269 = vector.multi_reduction <add>, %268, %cst_49 [0] : vector<8x32xf32> to vector<32xf32>
    %270 = vector.shape_cast %269 : vector<32xf32> to vector<1x32xf32>
    %271 = tpu.concatenate %243, %252, %261, %270 in 0 : vector<1x32xf32>, vector<1x32xf32>, vector<1x32xf32>, vector<1x32xf32> -> vector<4x32xf32>
    %c0_50 = arith.constant 0 : index
    %c0_51 = arith.constant 0 : index
    %272 = vector.load %arg6[%c0_50, %c0_51] : memref<32x128xf32, #tpu.memory_space<vmem>>, vector<32x128xf32>
    %c0_52 = arith.constant 0 : index
    %c0_53 = arith.constant 0 : index
    %273 = vector.load %arg4[%c0_52, %c0_53] : memref<4x1xf32, #tpu.memory_space<vmem>>, vector<4x1xf32>
    %c0_54 = arith.constant 0 : index
    %c0_55 = arith.constant 0 : index
    %274 = vector.load %arg5[%c0_54, %c0_55] : memref<1x128xf32, #tpu.memory_space<vmem>>, vector<1x128xf32>
    %275 = vector.broadcast %273 : vector<4x1xf32> to vector<4x128xf32>
    %276 = vector.broadcast %274 : vector<1x128xf32> to vector<4x128xf32>
    %277 = arith.mulf %275, %276 : vector<4x128xf32>
    %c0_56 = arith.constant 0 : index
    %c0_57 = arith.constant 0 : index
    %278 = vector.load %arg7[%c0_56, %c0_57] : memref<1x128xf32, #tpu.memory_space<vmem>>, vector<1x128xf32>
    %279 = vector.broadcast %278 : vector<1x128xf32> to vector<4x128xf32>
    %280 = arith.addf %277, %279 : vector<4x128xf32>
    %cst_58 = arith.constant 0.000000e+00 : f32
    %281 = vector.broadcast %cst_58 : f32 to vector<1x32xf32>
    %cst_59 = arith.constant 0.000000e+00 : f32
    %282 = vector.broadcast %cst_59 : f32 to vector<1x32xf32>
    %283 = vector.extract_strided_slice %280 {offsets = [0, 0], sizes = [1, 128], strides = [1, 1]} : vector<4x128xf32> to vector<1x128xf32>
    %cst_60 = arith.constant dense<0.000000e+00> : vector<1x128xf32>
    %284 = tpu.matmul %281, %272, %cst_60 {dimension_numbers = #tpu.dot_dimension_numbers<[1], [0], [0], [1], [0, 0, 1, 1], [], []>} : vector<1x32xf32>, vector<32x128xf32>, vector<1x128xf32> -> vector<1x128xf32>
    %285 = arith.addf %283, %284 : vector<1x128xf32>
    %286 = vector.extract_strided_slice %285 {offsets = [0, 0], sizes = [1, 32], strides = [1, 1]} : vector<1x128xf32> to vector<1x32xf32>
    %287 = arith.negf %286 : vector<1x32xf32>
    %288 = math.exp %287 : vector<1x32xf32>
    %cst_61 = arith.constant 1.000000e+00 : f32
    %289 = vector.broadcast %cst_61 : f32 to vector<1x32xf32>
    %290 = arith.addf %289, %288 : vector<1x32xf32>
    %291 = arith.divf %289, %290 : vector<1x32xf32>
    %292 = vector.extract_strided_slice %285 {offsets = [0, 32], sizes = [1, 32], strides = [1, 1]} : vector<1x128xf32> to vector<1x32xf32>
    %293 = arith.negf %292 : vector<1x32xf32>
    %294 = math.exp %293 : vector<1x32xf32>
    %cst_62 = arith.constant 1.000000e+00 : f32
    %295 = vector.broadcast %cst_62 : f32 to vector<1x32xf32>
    %296 = arith.addf %295, %294 : vector<1x32xf32>
    %297 = arith.divf %295, %296 : vector<1x32xf32>
    %298 = vector.extract_strided_slice %285 {offsets = [0, 64], sizes = [1, 32], strides = [1, 1]} : vector<1x128xf32> to vector<1x32xf32>
    %299 = math.tanh %298 : vector<1x32xf32>
    %300 = vector.extract_strided_slice %285 {offsets = [0, 96], sizes = [1, 32], strides = [1, 1]} : vector<1x128xf32> to vector<1x32xf32>
    %301 = arith.negf %300 : vector<1x32xf32>
    %302 = math.exp %301 : vector<1x32xf32>
    %cst_63 = arith.constant 1.000000e+00 : f32
    %303 = vector.broadcast %cst_63 : f32 to vector<1x32xf32>
    %304 = arith.addf %303, %302 : vector<1x32xf32>
    %305 = arith.divf %303, %304 : vector<1x32xf32>
    %306 = arith.mulf %297, %282 : vector<1x32xf32>
    %307 = arith.mulf %291, %299 : vector<1x32xf32>
    %308 = arith.addf %306, %307 : vector<1x32xf32>
    %309 = math.tanh %308 : vector<1x32xf32>
    %310 = arith.mulf %305, %309 : vector<1x32xf32>
    %311 = vector.extract_strided_slice %280 {offsets = [1, 0], sizes = [1, 128], strides = [1, 1]} : vector<4x128xf32> to vector<1x128xf32>
    %cst_64 = arith.constant dense<0.000000e+00> : vector<1x128xf32>
    %312 = tpu.matmul %310, %272, %cst_64 {dimension_numbers = #tpu.dot_dimension_numbers<[1], [0], [0], [1], [0, 0, 1, 1], [], []>} : vector<1x32xf32>, vector<32x128xf32>, vector<1x128xf32> -> vector<1x128xf32>
    %313 = arith.addf %311, %312 : vector<1x128xf32>
    %314 = vector.extract_strided_slice %313 {offsets = [0, 0], sizes = [1, 32], strides = [1, 1]} : vector<1x128xf32> to vector<1x32xf32>
    %315 = arith.negf %314 : vector<1x32xf32>
    %316 = math.exp %315 : vector<1x32xf32>
    %cst_65 = arith.constant 1.000000e+00 : f32
    %317 = vector.broadcast %cst_65 : f32 to vector<1x32xf32>
    %318 = arith.addf %317, %316 : vector<1x32xf32>
    %319 = arith.divf %317, %318 : vector<1x32xf32>
    %320 = vector.extract_strided_slice %313 {offsets = [0, 32], sizes = [1, 32], strides = [1, 1]} : vector<1x128xf32> to vector<1x32xf32>
    %321 = arith.negf %320 : vector<1x32xf32>
    %322 = math.exp %321 : vector<1x32xf32>
    %cst_66 = arith.constant 1.000000e+00 : f32
    %323 = vector.broadcast %cst_66 : f32 to vector<1x32xf32>
    %324 = arith.addf %323, %322 : vector<1x32xf32>
    %325 = arith.divf %323, %324 : vector<1x32xf32>
    %326 = vector.extract_strided_slice %313 {offsets = [0, 64], sizes = [1, 32], strides = [1, 1]} : vector<1x128xf32> to vector<1x32xf32>
    %327 = math.tanh %326 : vector<1x32xf32>
    %328 = vector.extract_strided_slice %313 {offsets = [0, 96], sizes = [1, 32], strides = [1, 1]} : vector<1x128xf32> to vector<1x32xf32>
    %329 = arith.negf %328 : vector<1x32xf32>
    %330 = math.exp %329 : vector<1x32xf32>
    %cst_67 = arith.constant 1.000000e+00 : f32
    %331 = vector.broadcast %cst_67 : f32 to vector<1x32xf32>
    %332 = arith.addf %331, %330 : vector<1x32xf32>
    %333 = arith.divf %331, %332 : vector<1x32xf32>
    %334 = arith.mulf %325, %308 : vector<1x32xf32>
    %335 = arith.mulf %319, %327 : vector<1x32xf32>
    %336 = arith.addf %334, %335 : vector<1x32xf32>
    %337 = math.tanh %336 : vector<1x32xf32>
    %338 = arith.mulf %333, %337 : vector<1x32xf32>
    %339 = vector.extract_strided_slice %280 {offsets = [2, 0], sizes = [1, 128], strides = [1, 1]} : vector<4x128xf32> to vector<1x128xf32>
    %cst_68 = arith.constant dense<0.000000e+00> : vector<1x128xf32>
    %340 = tpu.matmul %338, %272, %cst_68 {dimension_numbers = #tpu.dot_dimension_numbers<[1], [0], [0], [1], [0, 0, 1, 1], [], []>} : vector<1x32xf32>, vector<32x128xf32>, vector<1x128xf32> -> vector<1x128xf32>
    %341 = arith.addf %339, %340 : vector<1x128xf32>
    %342 = vector.extract_strided_slice %341 {offsets = [0, 0], sizes = [1, 32], strides = [1, 1]} : vector<1x128xf32> to vector<1x32xf32>
    %343 = arith.negf %342 : vector<1x32xf32>
    %344 = math.exp %343 : vector<1x32xf32>
    %cst_69 = arith.constant 1.000000e+00 : f32
    %345 = vector.broadcast %cst_69 : f32 to vector<1x32xf32>
    %346 = arith.addf %345, %344 : vector<1x32xf32>
    %347 = arith.divf %345, %346 : vector<1x32xf32>
    %348 = vector.extract_strided_slice %341 {offsets = [0, 32], sizes = [1, 32], strides = [1, 1]} : vector<1x128xf32> to vector<1x32xf32>
    %349 = arith.negf %348 : vector<1x32xf32>
    %350 = math.exp %349 : vector<1x32xf32>
    %cst_70 = arith.constant 1.000000e+00 : f32
    %351 = vector.broadcast %cst_70 : f32 to vector<1x32xf32>
    %352 = arith.addf %351, %350 : vector<1x32xf32>
    %353 = arith.divf %351, %352 : vector<1x32xf32>
    %354 = vector.extract_strided_slice %341 {offsets = [0, 64], sizes = [1, 32], strides = [1, 1]} : vector<1x128xf32> to vector<1x32xf32>
    %355 = math.tanh %354 : vector<1x32xf32>
    %356 = vector.extract_strided_slice %341 {offsets = [0, 96], sizes = [1, 32], strides = [1, 1]} : vector<1x128xf32> to vector<1x32xf32>
    %357 = arith.negf %356 : vector<1x32xf32>
    %358 = math.exp %357 : vector<1x32xf32>
    %cst_71 = arith.constant 1.000000e+00 : f32
    %359 = vector.broadcast %cst_71 : f32 to vector<1x32xf32>
    %360 = arith.addf %359, %358 : vector<1x32xf32>
    %361 = arith.divf %359, %360 : vector<1x32xf32>
    %362 = arith.mulf %353, %336 : vector<1x32xf32>
    %363 = arith.mulf %347, %355 : vector<1x32xf32>
    %364 = arith.addf %362, %363 : vector<1x32xf32>
    %365 = math.tanh %364 : vector<1x32xf32>
    %366 = arith.mulf %361, %365 : vector<1x32xf32>
    %367 = vector.extract_strided_slice %280 {offsets = [3, 0], sizes = [1, 128], strides = [1, 1]} : vector<4x128xf32> to vector<1x128xf32>
    %cst_72 = arith.constant dense<0.000000e+00> : vector<1x128xf32>
    %368 = tpu.matmul %366, %272, %cst_72 {dimension_numbers = #tpu.dot_dimension_numbers<[1], [0], [0], [1], [0, 0, 1, 1], [], []>} : vector<1x32xf32>, vector<32x128xf32>, vector<1x128xf32> -> vector<1x128xf32>
    %369 = arith.addf %367, %368 : vector<1x128xf32>
    %370 = vector.extract_strided_slice %369 {offsets = [0, 0], sizes = [1, 32], strides = [1, 1]} : vector<1x128xf32> to vector<1x32xf32>
    %371 = arith.negf %370 : vector<1x32xf32>
    %372 = math.exp %371 : vector<1x32xf32>
    %cst_73 = arith.constant 1.000000e+00 : f32
    %373 = vector.broadcast %cst_73 : f32 to vector<1x32xf32>
    %374 = arith.addf %373, %372 : vector<1x32xf32>
    %375 = arith.divf %373, %374 : vector<1x32xf32>
    %376 = vector.extract_strided_slice %369 {offsets = [0, 32], sizes = [1, 32], strides = [1, 1]} : vector<1x128xf32> to vector<1x32xf32>
    %377 = arith.negf %376 : vector<1x32xf32>
    %378 = math.exp %377 : vector<1x32xf32>
    %cst_74 = arith.constant 1.000000e+00 : f32
    %379 = vector.broadcast %cst_74 : f32 to vector<1x32xf32>
    %380 = arith.addf %379, %378 : vector<1x32xf32>
    %381 = arith.divf %379, %380 : vector<1x32xf32>
    %382 = vector.extract_strided_slice %369 {offsets = [0, 64], sizes = [1, 32], strides = [1, 1]} : vector<1x128xf32> to vector<1x32xf32>
    %383 = math.tanh %382 : vector<1x32xf32>
    %384 = vector.extract_strided_slice %369 {offsets = [0, 96], sizes = [1, 32], strides = [1, 1]} : vector<1x128xf32> to vector<1x32xf32>
    %385 = arith.negf %384 : vector<1x32xf32>
    %386 = math.exp %385 : vector<1x32xf32>
    %cst_75 = arith.constant 1.000000e+00 : f32
    %387 = vector.broadcast %cst_75 : f32 to vector<1x32xf32>
    %388 = arith.addf %387, %386 : vector<1x32xf32>
    %389 = arith.divf %387, %388 : vector<1x32xf32>
    %390 = arith.mulf %381, %364 : vector<1x32xf32>
    %391 = arith.mulf %375, %383 : vector<1x32xf32>
    %392 = arith.addf %390, %391 : vector<1x32xf32>
    %393 = math.tanh %392 : vector<1x32xf32>
    %394 = arith.mulf %389, %393 : vector<1x32xf32>
    %c0_76 = arith.constant 0 : index
    %c0_77 = arith.constant 0 : index
    %395 = vector.load %arg8[%c0_76, %c0_77] : memref<32x32xf32, #tpu.memory_space<vmem>>, vector<32x32xf32>
    %cst_78 = arith.constant dense<0.000000e+00> : vector<1x32xf32>
    %396 = tpu.matmul %394, %395, %cst_78 {dimension_numbers = #tpu.dot_dimension_numbers<[1], [0], [0], [1], [0, 0, 1, 1], [], []>} : vector<1x32xf32>, vector<32x32xf32>, vector<1x32xf32> -> vector<1x32xf32>
    %c0_79 = arith.constant 0 : index
    %c0_80 = arith.constant 0 : index
    %397 = vector.load %arg9[%c0_79, %c0_80] : memref<1x32xf32, #tpu.memory_space<vmem>>, vector<1x32xf32>
    %398 = arith.addf %396, %397 : vector<1x32xf32>
    %c0_81 = arith.constant 0 : index
    %c0_82 = arith.constant 0 : index
    %399 = vector.load %arg10[%c0_81, %c0_82] : memref<6x10xf32, #tpu.memory_space<vmem>>, vector<6x10xf32>
    %c0_83 = arith.constant 0 : index
    %c0_84 = arith.constant 0 : index
    %400 = vector.load %arg11[%c0_83, %c0_84] : memref<10x32xf32, #tpu.memory_space<vmem>>, vector<10x32xf32>
    %cst_85 = arith.constant dense<0.000000e+00> : vector<6x32xf32>
    %401 = tpu.matmul %399, %400, %cst_85 {dimension_numbers = #tpu.dot_dimension_numbers<[1], [0], [0], [1], [0, 0, 1, 1], [], []>} : vector<6x10xf32>, vector<10x32xf32>, vector<6x32xf32> -> vector<6x32xf32>
    %c0_86 = arith.constant 0 : index
    %c0_87 = arith.constant 0 : index
    %402 = vector.load %arg12[%c0_86, %c0_87] : memref<1x32xf32, #tpu.memory_space<vmem>>, vector<1x32xf32>
    %403 = vector.broadcast %402 : vector<1x32xf32> to vector<6x32xf32>
    %404 = arith.addf %401, %403 : vector<6x32xf32>
    %405 = tpu.concatenate %271, %398, %404 in 0 : vector<4x32xf32>, vector<1x32xf32>, vector<6x32xf32> -> vector<11x32xf32>
    %c0_88 = arith.constant 0 : index
    %c0_89 = arith.constant 0 : index
    %406 = vector.load %arg14[%c0_88, %c0_89] : memref<11x32xf32, #tpu.memory_space<vmem>>, vector<11x32xf32>
    tpu.vector_store %arg14[%c0_88, %c0_89], %405 {strides = array<i32>} : memref<11x32xf32, #tpu.memory_space<vmem>>, vector<11x32xf32>,
    return
  }
}

</mosaic_0001>

<llo_original>
// kernel: pdf_organizer_forward.1
$region0: #{pdf_organizer_forward.1}
  #allocation0 [shape = 'u32[]', space=smem, size = 0x4, offset = 0x4, fixed_abs, tag = 'smem constant byte address 0x4 - core index']
  #allocation1 [shape = 'u32[144,128]{1,0:T(1,128)}', space=vmem, size = 0x12000, scoped, tag = 'internal scratch']
  %s0 = inlined_call_operand.vmem [shape: f32[8,16], index: 0, kind: input, shape index: {}]
  %s1 = inlined_call_operand.hbm [shape: f32[16,128], index: 1, kind: input, shape index: {}]
  %s2 = inlined_call_operand.hbm [shape: f32[32,128], index: 2, kind: input, shape index: {}]
  %s3 = inlined_call_operand.hbm [shape: f32[1,128], index: 3, kind: input, shape index: {}]
  %s4 = inlined_call_operand.vmem [shape: f32[4,1], index: 4, kind: input, shape index: {}]
  %s5 = inlined_call_operand.hbm [shape: f32[1,128], index: 5, kind: input, shape index: {}]
  %s6 = inlined_call_operand.hbm [shape: f32[32,128], index: 6, kind: input, shape index: {}]
  %s7 = inlined_call_operand.hbm [shape: f32[1,128], index: 7, kind: input, shape index: {}]
  %s8 = inlined_call_operand.hbm [shape: f32[32,32], index: 8, kind: input, shape index: {}]
  %s9 = inlined_call_operand.hbm [shape: f32[1,32], index: 9, kind: input, shape index: {}]
  %s10 = inlined_call_operand.hbm [shape: f32[6,10], index: 10, kind: input, shape index: {}]
  %s11 = inlined_call_operand.hbm [shape: f32[10,32], index: 11, kind: input, shape index: {}]
  %s12 = inlined_call_operand.hbm [shape: f32[1,32], index: 12, kind: input, shape index: {}]
  %s13 = inlined_call_operand.hbm [shape: s32[4], index: 13, kind: input, shape index: {}]
  %s14 = inlined_call_operand.hbm [shape: f32[11,32], index: 14, kind: output, shape index: {}]
  %s15 = sld [smem:[#allocation0]]
  $region114: #{pdf_organizer_forward.1} parent=0
    _
  %s17 = ssub.s32 1, %s15
  %s18 = scalar_select 0, %s17, %s15
  $region1: #{pdf_organizer_forward.1} parent=0
    #allocation2 [shape = 'u8[8192]{0}', space=vmem, size = 0x2000, scoped, tag = 'input window, operand 1, single buffered']
    #allocation3 [shape = 's32[1]{0}', space=sflag, size = 0x4, scoped, tag = 'scoped memory for pdf_organizer_forward.1']
    #allocation4 [shape = 's32[1]{0}', space=sflag, size = 0x4, scoped, tag = 'scoped memory for pdf_organizer_forward.1']
    #allocation5 [shape = 's32[1]{0}', space=sflag, size = 0x4, scoped, tag = 'scoped memory for pdf_organizer_forward.1']
    #allocation6 [shape = 'u8[16384]{0}', space=vmem, size = 0x4000, scoped, tag = 'input window, operand 2, single buffered']
    #allocation7 [shape = 's32[1]{0}', space=sflag, size = 0x4, scoped, tag = 'scoped memory for pdf_organizer_forward.1']
    #allocation8 [shape = 'u8[512]{0}', space=vmem, size = 0x400, scoped, tag = 'input window, operand 3, single buffered']
    #allocation9 [shape = 'u8[512]{0}', space=vmem, size = 0x400, scoped, tag = 'input window, operand 5, single buffered']
    #allocation10 [shape = 's32[1]{0}', space=sflag, size = 0x4, scoped, tag = 'scoped memory for pdf_organizer_forward.1']
    #allocation11 [shape = 'u8[16384]{0}', space=vmem, size = 0x4000, scoped, tag = 'input window, operand 6, single buffered']
    #allocation12 [shape = 'u8[512]{0}', space=vmem, size = 0x400, scoped, tag = 'input window, operand 7, single buffered']
    #allocation13 [shape = 's32[1]{0}', space=sflag, size = 0x4, scoped, tag = 'scoped memory for pdf_organizer_forward.1']
    #allocation14 [shape = 'u8[16384]{0}', space=vmem, size = 0x4000, scoped, tag = 'input window, operand 8, single buffered']
    #allocation15 [shape = 'u8[512]{0}', space=vmem, size = 0x400, scoped, tag = 'input window, operand 9, single buffered']
    #allocation16 [shape = 's32[1]{0}', space=sflag, size = 0x4, scoped, tag = 'scoped memory for pdf_organizer_forward.1']
    #allocation17 [shape = 'u8[4096]{0}', space=vmem, size = 0x1000, scoped, tag = 'input window, operand 10, single buffered']
    #allocation18 [shape = 'u8[8192]{0}', space=vmem, size = 0x2000, scoped, tag = 'input window, operand 11, single buffered']
    #allocation19 [shape = 's32[1]{0}', space=sflag, size = 0x4, scoped, tag = 'scoped memory for pdf_organizer_forward.1']
    #allocation20 [shape = 'u8[512]{0}', space=vmem, size = 0x400, scoped, tag = 'input window, operand 12, single buffered']
    #allocation21 [shape = 'u8[512]{0}', space=smem, size = 0x200, scoped, tag = 'input window, operand 13, single buffered']
    #allocation22 [shape = 'u8[8192]{0}', space=vmem, size = 0x2000, scoped, tag = 'output window, operand 0, single buffered']
    %19 = vsyncpa [#allocation3], 0
    %20 = vsyncpa [#allocation7], 0
    %21 = vsyncpa [#allocation10], 0
    %22 = vsyncpa [#allocation13], 0
    %23 = vsyncpa [#allocation16], 0
    %24 = vsyncpa [#allocation19], 0
    %25 = vsyncpa [#allocation5], 0
    %26 = vsyncpa [#allocation4], 0
    // Predicated region
    $region2: #{pdf_organizer_forward.1} parent=1 // pred_check
      _
    $region3: #{pdf_organizer_forward.1} parent=1 // pred_check_branch
      %28 = sbr.rel (0) target = $region5
    $region4: #{pdf_organizer_forward.1} parent=1 // pred_region
      _
    $region5: #{pdf_organizer_forward.1} parent=1 // pred_fallthru
      _
    // Predicated region
    $region6: #{pdf_organizer_forward.1} parent=1 // pred_check
      _
    $region7: #{pdf_organizer_forward.1} parent=1 // pred_check_branch
      %30 = sbr.rel (0) target = $region9
    $region8: #{pdf_organizer_forward.1} parent=1 // pred_region
      %s32 = ssub.s32 256, 256
      %33 = vsyncadd [#allocation3], %s32
      %s34 = sshll.u32 [#allocation2], 4
      %s35 = int_to_ptr.vmem [resolvable:$true] %s34
      %40 = dma.hbm_to_vmem [thread:$0]  %s1, 256, %s35, [#allocation3], 128, 128, 8
    $region9: #{pdf_organizer_forward.1} parent=1 // pred_fallthru
      _
    // Predicated region
    $region10: #{pdf_organizer_forward.1} parent=1 // pred_check
      _
    $region11: #{pdf_organizer_forward.1} parent=1 // pred_check_branch
      %42 = sbr.rel (0) target = $region13
    $region12: #{pdf_organizer_forward.1} parent=1 // pred_region
      %s44 = ssub.s32 512, 512
      %45 = vsyncadd [#allocation7], %s44
      %s46 = sshll.u32 [#allocation6], 4
      %s47 = int_to_ptr.vmem [resolvable:$true] %s46
      %52 = dma.hbm_to_vmem [thread:$0]  %s2, 512, %s47, [#allocation7], 128, 128, 8
    $region13: #{pdf_organizer_forward.1} parent=1 // pred_fallthru
      _
    // Predicated region
    $region14: #{pdf_organizer_forward.1} parent=1 // pred_check
      _
    $region15: #{pdf_organizer_forward.1} parent=1 // pred_check_branch
      %54 = sbr.rel (0) target = $region17
    $region16: #{pdf_organizer_forward.1} parent=1 // pred_region
      %s56 = ssub.s32 16, 16
      %57 = vsyncadd [#allocation7], %s56
      %s59 = sshll.u32 [#allocation8], 4
      %s60 = int_to_ptr.vmem [resolvable:$true] %s59
      %62 = dma.hbm_to_vmem [thread:$0]  %s3, 16, %s60, [#allocation7]
    $region17: #{pdf_organizer_forward.1} parent=1 // pred_fallthru
      _
    // Predicated region
    $region18: #{pdf_organizer_forward.1} parent=1 // pred_check
      _
    $region19: #{pdf_organizer_forward.1} parent=1 // pred_check_branch
      %64 = sbr.rel (0) target = $region21
    $region20: #{pdf_organizer_forward.1} parent=1 // pred_region
      _
    $region21: #{pdf_organizer_forward.1} parent=1 // pred_fallthru
      _
    // Predicated region
    $region22: #{pdf_organizer_forward.1} parent=1 // pred_check
      _
    $region23: #{pdf_organizer_forward.1} parent=1 // pred_check_branch
      %66 = sbr.rel (0) target = $region25
    $region24: #{pdf_organizer_forward.1} parent=1 // pred_region
      %s68 = ssub.s32 16, 16
      %69 = vsyncadd [#allocation10], %s68
      %s71 = sshll.u32 [#allocation9], 4
      %s72 = int_to_ptr.vmem [resolvable:$true] %s71
      %74 = dma.hbm_to_vmem [thread:$0]  %s5, 16, %s72, [#allocation10]
    $region25: #{pdf_organizer_forward.1} parent=1 // pred_fallthru
      _
    // Predicated region
    $region26: #{pdf_organizer_forward.1} parent=1 // pred_check
      _
    $region27: #{pdf_organizer_forward.1} parent=1 // pred_check_branch
      %76 = sbr.rel (0) target = $region29
    $region28: #{pdf_organizer_forward.1} parent=1 // pred_region
      %s78 = ssub.s32 512, 512
      %79 = vsyncadd [#allocation10], %s78
      %s80 = sshll.u32 [#allocation11], 4
      %s81 = int_to_ptr.vmem [resolvable:$true] %s80
      %86 = dma.hbm_to_vmem [thread:$0]  %s6, 512, %s81, [#allocation10], 128, 128, 8
    $region29: #{pdf_organizer_forward.1} parent=1 // pred_fallthru
      _
    // Predicated region
    $region30: #{pdf_organizer_forward.1} parent=1 // pred_check
      _
    $region31: #{pdf_organizer_forward.1} parent=1 // pred_check_branch
      %88 = sbr.rel (0) target = $region33
    $region32: #{pdf_organizer_forward.1} parent=1 // pred_region
      %s90 = ssub.s32 16, 16
      %91 = vsyncadd [#allocation13], %s90
      %s93 = sshll.u32 [#allocation12], 4
      %s94 = int_to_ptr.vmem [resolvable:$true] %s93
      %96 = dma.hbm_to_vmem [thread:$0]  %s7, 16, %s94, [#allocation13]
    $region33: #{pdf_organizer_forward.1} parent=1 // pred_fallthru
      _
    // Predicated region
    $region34: #{pdf_organizer_forward.1} parent=1 // pred_check
      _
    $region35: #{pdf_organizer_forward.1} parent=1 // pred_check_branch
      %98 = sbr.rel (0) target = $region37
    $region36: #{pdf_organizer_forward.1} parent=1 // pred_region
      %s100 = ssub.s32 512, 512
      %101 = vsyncadd [#allocation13], %s100
      %s102 = sshll.u32 [#allocation14], 4
      %s103 = int_to_ptr.vmem [resolvable:$true] %s102
      %108 = dma.hbm_to_vmem [thread:$0]  %s8, 512, %s103, [#allocation13], 128, 128, 8
    $region37: #{pdf_organizer_forward.1} parent=1 // pred_fallthru
      _
    // Predicated region
    $region38: #{pdf_organizer_forward.1} parent=1 // pred_check
      _
    $region39: #{pdf_organizer_forward.1} parent=1 // pred_check_branch
      %110 = sbr.rel (0) target = $region41
    $region40: #{pdf_organizer_forward.1} parent=1 // pred_region
      %s112 = ssub.s32 16, 16
      %113 = vsyncadd [#allocation16], %s112
      %s115 = sshll.u32 [#allocation15], 4
      %s116 = int_to_ptr.vmem [resolvable:$true] %s115
      %118 = dma.hbm_to_vmem [thread:$0]  %s9, 16, %s116, [#allocation16]
    $region41: #{pdf_organizer_forward.1} parent=1 // pred_fallthru
      _
    // Predicated region
    $region42: #{pdf_organizer_forward.1} parent=1 // pred_check
      _
    $region43: #{pdf_organizer_forward.1} parent=1 // pred_check_branch
      %120 = sbr.rel (0) target = $region45
    $region44: #{pdf_organizer_forward.1} parent=1 // pred_region
      %s122 = ssub.s32 128, 128
      %123 = vsyncadd [#allocation16], %s122
      %s125 = sshll.u32 [#allocation17], 4
      %s126 = int_to_ptr.vmem [resolvable:$true] %s125
      %128 = dma.hbm_to_vmem [thread:$0]  %s10, 128, %s126, [#allocation16]
    $region45: #{pdf_organizer_forward.1} parent=1 // pred_fallthru
      _
    // Predicated region
    $region46: #{pdf_organizer_forward.1} parent=1 // pred_check
      _
    $region47: #{pdf_organizer_forward.1} parent=1 // pred_check_branch
      %130 = sbr.rel (0) target = $region49
    $region48: #{pdf_organizer_forward.1} parent=1 // pred_region
      %s132 = ssub.s32 256, 256
      %133 = vsyncadd [#allocation19], %s132
      %s134 = sshll.u32 [#allocation18], 4
      %s135 = int_to_ptr.vmem [resolvable:$true] %s134
      %140 = dma.hbm_to_vmem [thread:$0]  %s11, 256, %s135, [#allocation19], 128, 128, 8
    $region49: #{pdf_organizer_forward.1} parent=1 // pred_fallthru
      _
    // Predicated region
    $region50: #{pdf_organizer_forward.1} parent=1 // pred_check
      _
    $region51: #{pdf_organizer_forward.1} parent=1 // pred_check_branch
      %142 = sbr.rel (0) target = $region53
    $region52: #{pdf_organizer_forward.1} parent=1 // pred_region
      %s144 = ssub.s32 16, 16
      %145 = vsyncadd [#allocation19], %s144
      %s147 = sshll.u32 [#allocation20], 4
      %s148 = int_to_ptr.vmem [resolvable:$true] %s147
      %150 = dma.hbm_to_vmem [thread:$0]  %s12, 16, %s148, [#allocation19]
    $region53: #{pdf_organizer_forward.1} parent=1 // pred_fallthru
      _
    // Predicated region
    $region54: #{pdf_organizer_forward.1} parent=1 // pred_check
      _
    $region55: #{pdf_organizer_forward.1} parent=1 // pred_check_branch
      %152 = sbr.rel (0) target = $region57
    $region56: #{pdf_organizer_forward.1} parent=1 // pred_region
      %s154 = ssub.s32 16, 16
      %155 = vsyncadd [#allocation5], %s154
      %158 = dma.hbm_to_smem %s13, 16, [#allocation21], [#allocation5]
    $region57: #{pdf_organizer_forward.1} parent=1 // pred_fallthru
      _
    // Predicated region
    $region58: #{pdf_organizer_forward.1} parent=1 // pred_check
      _
    $region59: #{pdf_organizer_forward.1} parent=1 // pred_check_branch
      %160 = sbr.rel (0) target = $region61
    $region60: #{pdf_organizer_forward.1} parent=1 // pred_region
      %161 = dma.done [#allocation3], 256
    $region61: #{pdf_organizer_forward.1} parent=1 // pred_fallthru
      _
    // Predicated region
    $region62: #{pdf_organizer_forward.1} parent=1 // pred_check
      _
    $region63: #{pdf_organizer_forward.1} parent=1 // pred_check_branch
      %163 = sbr.rel (0) target = $region65
    $region64: #{pdf_organizer_forward.1} parent=1 // pred_region
      %164 = dma.done [#allocation7], 512
    $region65: #{pdf_organizer_forward.1} parent=1 // pred_fallthru
      _
    // Predicated region
    $region66: #{pdf_organizer_forward.1} parent=1 // pred_check
      _
    $region67: #{pdf_organizer_forward.1} parent=1 // pred_check_branch
      %166 = sbr.rel (0) target = $region69
    $region68: #{pdf_organizer_forward.1} parent=1 // pred_region
      %167 = dma.done [#allocation7], 16
    $region69: #{pdf_organizer_forward.1} parent=1 // pred_fallthru
      _
    // Predicated region
    $region70: #{pdf_organizer_forward.1} parent=1 // pred_check
      _
    $region71: #{pdf_organizer_forward.1} parent=1 // pred_check_branch
      %169 = sbr.rel (0) target = $region73
    $region72: #{pdf_organizer_forward.1} parent=1 // pred_region
      %170 = dma.done [#allocation10], 16
    $region73: #{pdf_organizer_forward.1} parent=1 // pred_fallthru
      _
    // Predicated region
    $region74: #{pdf_organizer_forward.1} parent=1 // pred_check
      _
    $region75: #{pdf_organizer_forward.1} parent=1 // pred_check_branch
      %172 = sbr.rel (0) target = $region77
    $region76: #{pdf_organizer_forward.1} parent=1 // pred_region
      %173 = dma.done [#allocation10], 512
    $region77: #{pdf_organizer_forward.1} parent=1 // pred_fallthru
      _
    // Predicated region
    $region78: #{pdf_organizer_forward.1} parent=1 // pred_check
      _
    $region79: #{pdf_organizer_forward.1} parent=1 // pred_check_branch
      %175 = sbr.rel (0) target = $region81
    $region80: #{pdf_organizer_forward.1} parent=1 // pred_region
      %176 = dma.done [#allocation13], 16
    $region81: #{pdf_organizer_forward.1} parent=1 // pred_fallthru
      _
    // Predicated region
    $region82: #{pdf_organizer_forward.1} parent=1 // pred_check
      _
    $region83: #{pdf_organizer_forward.1} parent=1 // pred_check_branch
      %178 = sbr.rel (0) target = $region85
    $region84: #{pdf_organizer_forward.1} parent=1 // pred_region
      %179 = dma.done [#allocation13], 512
    $region85: #{pdf_organizer_forward.1} parent=1 // pred_fallthru
      _
    // Predicated region
    $region86: #{pdf_organizer_forward.1} parent=1 // pred_check
      _
    $region87: #{pdf_organizer_forward.1} parent=1 // pred_check_branch
      %181 = sbr.rel (0) target = $region89
    $region88: #{pdf_organizer_forward.1} parent=1 // pred_region
      %182 = dma.done [#allocation16], 16
    $region89: #{pdf_organizer_forward.1} parent=1 // pred_fallthru
      _
    // Predicated region
    $region90: #{pdf_organizer_forward.1} parent=1 // pred_check
      _
    $region91: #{pdf_organizer_forward.1} parent=1 // pred_check_branch
      %184 = sbr.rel (0) target = $region93
    $region92: #{pdf_organizer_forward.1} parent=1 // pred_region
      %185 = dma.done [#allocation16], 128
    $region93: #{pdf_organizer_forward.1} parent=1 // pred_fallthru
      _
    // Predicated region
    $region94: #{pdf_organizer_forward.1} parent=1 // pred_check
      _
    $region95: #{pdf_organizer_forward.1} parent=1 // pred_check_branch
      %187 = sbr.rel (0) target = $region97
    $region96: #{pdf_organizer_forward.1} parent=1 // pred_region
      %188 = dma.done [#allocation19], 256
    $region97: #{pdf_organizer_forward.1} parent=1 // pred_fallthru
      _
    // Predicated region
    $region98: #{pdf_organizer_forward.1} parent=1 // pred_check
      _
    $region99: #{pdf_organizer_forward.1} parent=1 // pred_check_branch
      %190 = sbr.rel (0) target = $region101
    $region100: #{pdf_organizer_forward.1} parent=1 // pred_region
      %191 = dma.done [#allocation19], 16
    $region101: #{pdf_organizer_forward.1} parent=1 // pred_fallthru
      _
    // Predicated region
    $region102: #{pdf_organizer_forward.1} parent=1 // pred_check
      _
    $region103: #{pdf_organizer_forward.1} parent=1 // pred_check_branch
      %193 = sbr.rel (0) target = $region105
    $region104: #{pdf_organizer_forward.1} parent=1 // pred_region
      %194 = dma.done [#allocation5], 16
    $region105: #{pdf_organizer_forward.1} parent=1 // pred_fallthru
      _
    %195 = sfence
    %v196 = vld [vmem:[#allocation6] sm:$0xff]
    %v197 = vld [vmem:[#allocation6 + $0x8] sm:$0xff]
    %v198 = vld [vmem:[#allocation6 + $0x10] sm:$0xff]
    %v199 = vld [vmem:[#allocation6 + $0x18] sm:$0xff]
    %v200 = vld [vmem:[%s0] sm:$0xff]
    %v201 = vld [vmem:[#allocation2] sm:$0xff]
    %v202 = vld [vmem:[#allocation2 + $0x8] sm:$0xff]
    %v203 = vld [vmem:[#allocation8] sm:$0x1]
    %v205 = vlaneseq
    %v206 = vshrl.u32 %v205, 7
    %v207 = vsub.s32 0, %v206
    %v208 = vrot.slane %v203, %v207
    %vm210 = vcmask 130048
    %v212 = vsel %vm210, %v200, 0
    %214 = vmatprep.subr.mxu0 0.0
    %215 = vmatpush1.msra.mxu0 %v201
    %216 = vmatprep.subr.mxu0 0.0
    %217 = vmatpush1.msra.mxu0 %v202
    %218 = vmatprep.subr.mxu0 0.0
    %219 = vmatpush1.msra.mxu0 0.0
    %220 = vmatprep.subr.mxu0 0.0
    %221 = vmatpush1.msra.mxu0 0.0
    %222 = vmatprep.subr.mxu0 0.0
    %223 = vmatpush1.msra.mxu0 0.0
    %224 = vmatprep.subr.mxu0 0.0
    %225 = vmatpush1.msra.mxu0 0.0
    %226 = vmatprep.subr.mxu0 0.0
    %227 = vmatpush1.msra.mxu0 0.0
    %228 = vmatprep.subr.mxu0 0.0
    %229 = vmatpush1.msra.mxu0 0.0
    %230 = vmatprep.subr.mxu0 0.0
    %231 = vmatpush1.msra.mxu0 0.0
    %232 = vmatprep.subr.mxu0 0.0
    %233 = vmatpush1.msra.mxu0 0.0
    %234 = vmatprep.subr.mxu0 0.0
    %235 = vmatpush1.msra.mxu0 0.0
    %236 = vmatprep.subr.mxu0 0.0
    %237 = vmatpush1.msra.mxu0 0.0
    %238 = vmatprep.subr.mxu0 0.0
    %239 = vmatpush1.msra.mxu0 0.0
    %240 = vmatprep.subr.mxu0 0.0
    %241 = vmatpush1.msra.mxu0 0.0
    %242 = vmatprep.subr.mxu0 0.0
    %243 = vmatpush1.msra.mxu0 0.0
    %244 = vmatprep.subr.mxu0 0.0
    %245 = vmatpush1.msra.mxu0 0.0
    %246 = vmatprep.subr.mxu0 0.0
    %247 = vmatpush1.msra.mxu0 0.0
    %248 = vmatprep.subr.mxu0 0.0
    %249 = vmatpush1.msra.mxu0 0.0
    %250 = vmatprep.subr.mxu0 0.0
    %251 = vmatpush1.msra.mxu0 0.0
    %252 = vmatprep.subr.mxu0 0.0
    %253 = vmatpush1.msra.mxu0 0.0
    %254 = vmatprep.subr.mxu0 0.0
    %255 = vmatpush1.msra.mxu0 0.0
    %256 = vmatprep.subr.mxu0 0.0
    %257 = vmatpush1.msra.mxu0 0.0
    %258 = vmatprep.subr.mxu0 0.0
    %259 = vmatpush1.msra.mxu0 0.0
    %260 = vmatprep.subr.mxu0 0.0
    %261 = vmatpush1.msra.mxu0 0.0
    %262 = vmatprep.subr.mxu0 0.0
    %263 = vmatpush1.msra.mxu0 0.0
    %264 = vmatprep.subr.mxu0 0.0
    %265 = vmatpush1.msra.mxu0 0.0
    %266 = vmatprep.subr.mxu0 0.0
    %267 = vmatpush1.msra.mxu0 0.0
    %268 = vmatprep.subr.mxu0 0.0
    %269 = vmatpush1.msra.mxu0 0.0
    %270 = vmatprep.subr.mxu0 0.0
    %271 = vmatpush1.msra.mxu0 0.0
    %272 = vmatprep.subr.mxu0 0.0
    %273 = vmatpush1.msra.mxu0 0.0
    %274 = vmatprep.subr.mxu0 0.0
    %275 = vmatpush1.msra.mxu0 0.0
    %276 = vmatprep.subr.mxu0 0.0
    %277 = vmatpush1.msra.mxu0 0.0
    %278 = vmatprep.mubr.f32.mxu0 0.0
    %279 = vmatmul.mubr.f32.gmra.mrb[0].mxu0 %v212
    %v280 = vpop.f32.mrb[0].mxu0
    %v281 = vadd.f32 %v208, %v280
    %v282 = vpop.f32.mrb[0].mxu0
    %283 = vdwg.mxu0
    %vm284 = vcmask 261120
    %v286 = vsel %vm284, 0.0, 0
    %288 = vmatprep.subr.mxu0 0.0
    %289 = vmatpush1.msra.mxu0 %v196
    %290 = vmatprep.subr.mxu0 0.0
    %291 = vmatpush1.msra.mxu0 %v197
    %292 = vmatprep.subr.mxu0 0.0
    %293 = vmatpush1.msra.mxu0 %v198
    %294 = vmatprep.subr.mxu0 0.0
    %295 = vmatpush1.msra.mxu0 %v199
    %296 = vmatprep.subr.mxu0 0.0
    %297 = vmatpush1.msra.mxu0 0.0
    %298 = vmatprep.subr.mxu0 0.0
    %299 = vmatpush1.msra.mxu0 0.0
    %300 = vmatprep.subr.mxu0 0.0
    %301 = vmatpush1.msra.mxu0 0.0
    %302 = vmatprep.subr.mxu0 0.0
    %303 = vmatpush1.msra.mxu0 0.0
    %304 = vmatprep.subr.mxu0 0.0
    %305 = vmatpush1.msra.mxu0 0.0
    %306 = vmatprep.subr.mxu0 0.0
    %307 = vmatpush1.msra.mxu0 0.0
    %308 = vmatprep.subr.mxu0 0.0
    %309 = vmatpush1.msra.mxu0 0.0
    %310 = vmatprep.subr.mxu0 0.0
    %311 = vmatpush1.msra.mxu0 0.0
    %312 = vmatprep.subr.mxu0 0.0
    %313 = vmatpush1.msra.mxu0 0.0
    %314 = vmatprep.subr.mxu0 0.0
    %315 = vmatpush1.msra.mxu0 0.0
    %316 = vmatprep.subr.mxu0 0.0
    %317 = vmatpush1.msra.mxu0 0.0
    %318 = vmatprep.subr.mxu0 0.0
    %319 = vmatpush1.msra.mxu0 0.0
    %320 = vmatprep.subr.mxu0 0.0
    %321 = vmatpush1.msra.mxu0 0.0
    %322 = vmatprep.subr.mxu0 0.0
    %323 = vmatpush1.msra.mxu0 0.0
    %324 = vmatprep.subr.mxu0 0.0
    %325 = vmatpush1.msra.mxu0 0.0
    %326 = vmatprep.subr.mxu0 0.0
    %327 = vmatpush1.msra.mxu0 0.0
    %328 = vmatprep.subr.mxu0 0.0
    %329 = vmatpush1.msra.mxu0 0.0
    %330 = vmatprep.subr.mxu0 0.0
    %331 = vmatpush1.msra.mxu0 0.0
    %332 = vmatprep.subr.mxu0 0.0
    %333 = vmatpush1.msra.mxu0 0.0
    %334 = vmatprep.subr.mxu0 0.0
    %335 = vmatpush1.msra.mxu0 0.0
    %336 = vmatprep.subr.mxu0 0.0
    %337 = vmatpush1.msra.mxu0 0.0
    %338 = vmatprep.subr.mxu0 0.0
    %339 = vmatpush1.msra.mxu0 0.0
    %340 = vmatprep.subr.mxu0 0.0
    %341 = vmatpush1.msra.mxu0 0.0
    %342 = vmatprep.subr.mxu0 0.0
    %343 = vmatpush1.msra.mxu0 0.0
    %344 = vmatprep.subr.mxu0 0.0
    %345 = vmatpush1.msra.mxu0 0.0
    %346 = vmatprep.subr.mxu0 0.0
    %347 = vmatpush1.msra.mxu0 0.0
    %348 = vmatprep.subr.mxu0 0.0
    %349 = vmatpush1.msra.mxu0 0.0
    %350 = vmatprep.subr.mxu0 0.0
    %351 = vmatpush1.msra.mxu0 0.0
    %352 = vmatprep.mubr.f32.mxu0 0.0
    %353 = vmatmul.mubr.f32.gmra.mrb[0].mxu0 %v286
    %v354 = vpop.f32.mrb[0].mxu0
    %v355 = vadd.f32 0.0, %v354
    %v356 = vpop.f32.mrb[0].mxu0
    %357 = vdwg.mxu0
    %v358 = vadd.f32 %v281, %v355
    %v359 = vxor.u32 %v358, 2147483648
    %v360 = vmul.f32 %v359, 1.442695
    %v361 = vpow.pop %v360
    %v362 = vadd.f32 %v361, 1.0
    %v363 = vrcp.pop %v362
    %v364 = vmul.f32 1.0, %v363
    %v365 = vtanh.pop %v358
    %v366 = vmul.f32 %v364, 0.0
    %368 = vrot.lane.b32.xlu0 %v365, 64
    %v369 = vpop.permute.xlu0 %368
    %v371 = vmul.f32 %v364, %v369
    %373 = vrot.lane.b32.xlu0 %v371, 32
    %v374 = vpop.permute.xlu0 %373
    %v376 = vadd.f32 %v366, %v374
    %v377 = vtanh.pop %v376
    %379 = vrot.lane.b32.xlu0 %v377, 64
    %v380 = vpop.permute.xlu0 %379
    %v382 = vmul.f32 %v364, %v380
    %384 = vrot.lane.b32.xlu0 %v382, 32
    %v385 = vpop.permute.xlu0 %384
    %v386 = vsel %vm284, %v385, 0
    %388 = vmatprep.subr.mxu0 0.0
    %389 = vmatpush1.msra.mxu0 %v196
    %390 = vmatprep.subr.mxu0 0.0
    %391 = vmatpush1.msra.mxu0 %v197
    %392 = vmatprep.subr.mxu0 0.0
    %393 = vmatpush1.msra.mxu0 %v198
    %394 = vmatprep.subr.mxu0 0.0
    %395 = vmatpush1.msra.mxu0 %v199
    %396 = vmatprep.subr.mxu0 0.0
    %397 = vmatpush1.msra.mxu0 0.0
    %398 = vmatprep.subr.mxu0 0.0
    %399 = vmatpush1.msra.mxu0 0.0
    %400 = vmatprep.subr.mxu0 0.0
    %401 = vmatpush1.msra.mxu0 0.0
    %402 = vmatprep.subr.mxu0 0.0
    %403 = vmatpush1.msra.mxu0 0.0
    %404 = vmatprep.subr.mxu0 0.0
    %405 = vmatpush1.msra.mxu0 0.0
    %406 = vmatprep.subr.mxu0 0.0
    %407 = vmatpush1.msra.mxu0 0.0
    %408 = vmatprep.subr.mxu0 0.0
    %409 = vmatpush1.msra.mxu0 0.0
    %410 = vmatprep.subr.mxu0 0.0
    %411 = vmatpush1.msra.mxu0 0.0
    %412 = vmatprep.subr.mxu0 0.0
    %413 = vmatpush1.msra.mxu0 0.0
    %414 = vmatprep.subr.mxu0 0.0
    %415 = vmatpush1.msra.mxu0 0.0
    %416 = vmatprep.subr.mxu0 0.0
    %417 = vmatpush1.msra.mxu0 0.0
    %418 = vmatprep.subr.mxu0 0.0
    %419 = vmatpush1.msra.mxu0 0.0
    %420 = vmatprep.subr.mxu0 0.0
    %421 = vmatpush1.msra.mxu0 0.0
    %422 = vmatprep.subr.mxu0 0.0
    %423 = vmatpush1.msra.mxu0 0.0
    %424 = vmatprep.subr.mxu0 0.0
    %425 = vmatpush1.msra.mxu0 0.0
    %426 = vmatprep.subr.mxu0 0.0
    %427 = vmatpush1.msra.mxu0 0.0
    %428 = vmatprep.subr.mxu0 0.0
    %429 = vmatpush1.msra.mxu0 0.0
    %430 = vmatprep.subr.mxu0 0.0
    %431 = vmatpush1.msra.mxu0 0.0
    %432 = vmatprep.subr.mxu0 0.0
    %433 = vmatpush1.msra.mxu0 0.0
    %434 = vmatprep.subr.mxu0 0.0
    %435 = vmatpush1.msra.mxu0 0.0
    %436 = vmatprep.subr.mxu0 0.0
    %437 = vmatpush1.msra.mxu0 0.0
    %438 = vmatprep.subr.mxu0 0.0
    %439 = vmatpush1.msra.mxu0 0.0
    %440 = vmatprep.subr.mxu0 0.0
    %441 = vmatpush1.msra.mxu0 0.0
    %442 = vmatprep.subr.mxu0 0.0
    %443 = vmatpush1.msra.mxu0 0.0
    %444 = vmatprep.subr.mxu0 0.0
    %445 = vmatpush1.msra.mxu0 0.0
    %446 = vmatprep.subr.mxu0 0.0
    %447 = vmatpush1.msra.mxu0 0.0
    %448 = vmatprep.subr.mxu0 0.0
    %449 = vmatpush1.msra.mxu0 0.0
    %450 = vmatprep.subr.mxu0 0.0
    %451 = vmatpush1.msra.mxu0 0.0
    %452 = vmatprep.mubr.f32.mxu0 0.0
    %453 = vmatmul.mubr.f32.gmra.mrb[0].mxu0 %v386
    %v454 = vpop.f32.mrb[0].mxu0
    %v455 = vadd.f32 0.0, %v454
    %v456 = vpop.f32.mrb[0].mxu0
    %457 = vdwg.mxu0
    %v459 = vrot.slane %v455, 7
    %v461 = vadd.f32 %v281, %v459
    %v462 = vxor.u32 %v461, 2147483648
    %v463 = vmul.f32 %v462, 1.442695
    %v464 = vpow.pop %v463
    %v465 = vadd.f32 %v464, 1.0
    %v466 = vrcp.pop %v465
    %v467 = vmul.f32 1.0, %v466
    %v468 = vtanh.pop %v461
    %v470 = vrot.slane %v376, 7
    %v472 = vmul.f32 %v467, %v470
    %474 = vrot.lane.b32.xlu0 %v468, 64
    %v475 = vpop.permute.xlu0 %474
    %v477 = vmul.f32 %v467, %v475
    %479 = vrot.lane.b32.xlu0 %v477, 32
    %v480 = vpop.permute.xlu0 %479
    %v482 = vadd.f32 %v472, %v480
    %v483 = vtanh.pop %v482
    %485 = vrot.lane.b32.xlu0 %v483, 64
    %v486 = vpop.permute.xlu0 %485
    %v488 = vmul.f32 %v467, %v486
    %v490 = vrot.slane %v488, 1
    %491 = vrot.lane.b32.xlu0 %v490, 32
    %v492 = vpop.permute.xlu0 %491
    %v493 = vsel %vm284, %v492, 0
    %495 = vmatprep.subr.mxu0 0.0
    %496 = vmatpush1.msra.mxu0 %v196
    %497 = vmatprep.subr.mxu0 0.0
    %498 = vmatpush1.msra.mxu0 %v197
    %499 = vmatprep.subr.mxu0 0.0
    %500 = vmatpush1.msra.mxu0 %v198
    %501 = vmatprep.subr.mxu0 0.0
    %502 = vmatpush1.msra.mxu0 %v199
    %503 = vmatprep.subr.mxu0 0.0
    %504 = vmatpush1.msra.mxu0 0.0
    %505 = vmatprep.subr.mxu0 0.0
    %506 = vmatpush1.msra.mxu0 0.0
    %507 = vmatprep.subr.mxu0 0.0
    %508 = vmatpush1.msra.mxu0 0.0
    %509 = vmatprep.subr.mxu0 0.0
    %510 = vmatpush1.msra.mxu0 0.0
    %511 = vmatprep.subr.mxu0 0.0
    %512 = vmatpush1.msra.mxu0 0.0
    %513 = vmatprep.subr.mxu0 0.0
    %514 = vmatpush1.msra.mxu0 0.0
    %515 = vmatprep.subr.mxu0 0.0
    %516 = vmatpush1.msra.mxu0 0.0
    %517 = vmatprep.subr.mxu0 0.0
    %518 = vmatpush1.msra.mxu0 0.0
    %519 = vmatprep.subr.mxu0 0.0
    %520 = vmatpush1.msra.mxu0 0.0
    %521 = vmatprep.subr.mxu0 0.0
    %522 = vmatpush1.msra.mxu0 0.0
    %523 = vmatprep.subr.mxu0 0.0
    %524 = vmatpush1.msra.mxu0 0.0
    %525 = vmatprep.subr.mxu0 0.0
    %526 = vmatpush1.msra.mxu0 0.0
    %527 = vmatprep.subr.mxu0 0.0
    %528 = vmatpush1.msra.mxu0 0.0
    %529 = vmatprep.subr.mxu0 0.0
    %530 = vmatpush1.msra.mxu0 0.0
    %531 = vmatprep.subr.mxu0 0.0
    %532 = vmatpush1.msra.mxu0 0.0
    %533 = vmatprep.subr.mxu0 0.0
    %534 = vmatpush1.msra.mxu0 0.0
    %535 = vmatprep.subr.mxu0 0.0
    %536 = vmatpush1.msra.mxu0 0.0
    %537 = vmatprep.subr.mxu0 0.0
    %538 = vmatpush1.msra.mxu0 0.0
    %539 = vmatprep.subr.mxu0 0.0
    %540 = vmatpush1.msra.mxu0 0.0
    %541 = vmatprep.subr.mxu0 0.0
    %542 = vmatpush1.msra.mxu0 0.0
    %543 = vmatprep.subr.mxu0 0.0
    %544 = vmatpush1.msra.mxu0 0.0
    %545 = vmatprep.subr.mxu0 0.0
    %546 = vmatpush1.msra.mxu0 0.0
    %547 = vmatprep.subr.mxu0 0.0
    %548 = vmatpush1.msra.mxu0 0.0
    %549 = vmatprep.subr.mxu0 0.0
    %550 = vmatpush1.msra.mxu0 0.0
    %551 = vmatprep.subr.mxu0 0.0
    %552 = vmatpush1.msra.mxu0 0.0
    %553 = vmatprep.subr.mxu0 0.0
    %554 = vmatpush1.msra.mxu0 0.0
    %555 = vmatprep.subr.mxu0 0.0
    %556 = vmatpush1.msra.mxu0 0.0
    %557 = vmatprep.subr.mxu0 0.0
    %558 = vmatpush1.msra.mxu0 0.0
    %559 = vmatprep.mubr.f32.mxu0 0.0
    %560 = vmatmul.mubr.f32.gmra.mrb[0].mxu0 %v493
    %v561 = vpop.f32.mrb[0].mxu0
    %v562 = vadd.f32 0.0, %v561
    %v563 = vpop.f32.mrb[0].mxu0
    %564 = vdwg.mxu0
    %v566 = vrot.slane %v562, 6
    %v568 = vadd.f32 %v281, %v566
    %v569 = vxor.u32 %v568, 2147483648
    %v570 = vmul.f32 %v569, 1.442695
    %v571 = vpow.pop %v570
    %v572 = vadd.f32 %v571, 1.0
    %v573 = vrcp.pop %v572
    %v574 = vmul.f32 1.0, %v573
    %v575 = vtanh.pop %v568
    %v577 = vrot.slane %v482, 7
    %v579 = vmul.f32 %v574, %v577
    %581 = vrot.lane.b32.xlu0 %v575, 64
    %v582 = vpop.permute.xlu0 %581
    %v584 = vmul.f32 %v574, %v582
    %586 = vrot.lane.b32.xlu0 %v584, 32
    %v587 = vpop.permute.xlu0 %586
    %v589 = vadd.f32 %v579, %v587
    %v590 = vtanh.pop %v589
    %592 = vrot.lane.b32.xlu0 %v590, 64
    %v593 = vpop.permute.xlu0 %592
    %v595 = vmul.f32 %v574, %v593
    %v597 = vrot.slane %v595, 2
    %598 = vrot.lane.b32.xlu0 %v597, 32
    %v599 = vpop.permute.xlu0 %598
    %v600 = vsel %vm284, %v599, 0
    %602 = vmatprep.subr.mxu0 0.0
    %603 = vmatpush1.msra.mxu0 %v196
    %604 = vmatprep.subr.mxu0 0.0
    %605 = vmatpush1.msra.mxu0 %v197
    %606 = vmatprep.subr.mxu0 0.0
    %607 = vmatpush1.msra.mxu0 %v198
    %608 = vmatprep.subr.mxu0 0.0
    %609 = vmatpush1.msra.mxu0 %v199
    %610 = vmatprep.subr.mxu0 0.0
    %611 = vmatpush1.msra.mxu0 0.0
    %612 = vmatprep.subr.mxu0 0.0
    %613 = vmatpush1.msra.mxu0 0.0
    %614 = vmatprep.subr.mxu0 0.0
    %615 = vmatpush1.msra.mxu0 0.0
    %616 = vmatprep.subr.mxu0 0.0
    %617 = vmatpush1.msra.mxu0 0.0
    %618 = vmatprep.subr.mxu0 0.0
    %619 = vmatpush1.msra.mxu0 0.0
    %620 = vmatprep.subr.mxu0 0.0
    %621 = vmatpush1.msra.mxu0 0.0
    %622 = vmatprep.subr.mxu0 0.0
    %623 = vmatpush1.msra.mxu0 0.0
    %624 = vmatprep.subr.mxu0 0.0
    %625 = vmatpush1.msra.mxu0 0.0
    %626 = vmatprep.subr.mxu0 0.0
    %627 = vmatpush1.msra.mxu0 0.0
    %628 = vmatprep.subr.mxu0 0.0
    %629 = vmatpush1.msra.mxu0 0.0
    %630 = vmatprep.subr.mxu0 0.0
    %631 = vmatpush1.msra.mxu0 0.0
    %632 = vmatprep.subr.mxu0 0.0
    %633 = vmatpush1.msra.mxu0 0.0
    %634 = vmatprep.subr.mxu0 0.0
    %635 = vmatpush1.msra.mxu0 0.0
    %636 = vmatprep.subr.mxu0 0.0
    %637 = vmatpush1.msra.mxu0 0.0
    %638 = vmatprep.subr.mxu0 0.0
    %639 = vmatpush1.msra.mxu0 0.0
    %640 = vmatprep.subr.mxu0 0.0
    %641 = vmatpush1.msra.mxu0 0.0
    %642 = vmatprep.subr.mxu0 0.0
    %643 = vmatpush1.msra.mxu0 0.0
    %644 = vmatprep.subr.mxu0 0.0
    %645 = vmatpush1.msra.mxu0 0.0
    %646 = vmatprep.subr.mxu0 0.0
    %647 = vmatpush1.msra.mxu0 0.0
    %648 = vmatprep.subr.mxu0 0.0
    %649 = vmatpush1.msra.mxu0 0.0
    %650 = vmatprep.subr.mxu0 0.0
    %651 = vmatpush1.msra.mxu0 0.0
    %652 = vmatprep.subr.mxu0 0.0
    %653 = vmatpush1.msra.mxu0 0.0
    %654 = vmatprep.subr.mxu0 0.0
    %655 = vmatpush1.msra.mxu0 0.0
    %656 = vmatprep.subr.mxu0 0.0
    %657 = vmatpush1.msra.mxu0 0.0
    %658 = vmatprep.subr.mxu0 0.0
    %659 = vmatpush1.msra.mxu0 0.0
    %660 = vmatprep.subr.mxu0 0.0
    %661 = vmatpush1.msra.mxu0 0.0
    %662 = vmatprep.subr.mxu0 0.0
    %663 = vmatpush1.msra.mxu0 0.0
    %664 = vmatprep.subr.mxu0 0.0
    %665 = vmatpush1.msra.mxu0 0.0
    %666 = vmatprep.mubr.f32.mxu0 0.0
    %667 = vmatmul.mubr.f32.gmra.mrb[0].mxu0 %v600
    %v668 = vpop.f32.mrb[0].mxu0
    %v669 = vadd.f32 0.0, %v668
    %v670 = vpop.f32.mrb[0].mxu0
    %671 = vdwg.mxu0
    %v673 = vrot.slane %v669, 5
    %v675 = vadd.f32 %v281, %v673
    %v676 = vxor.u32 %v675, 2147483648
    %v677 = vmul.f32 %v676, 1.442695
    %v678 = vpow.pop %v677
    %v679 = vadd.f32 %v678, 1.0
    %v680 = vrcp.pop %v679
    %v681 = vmul.f32 1.0, %v680
    %v682 = vtanh.pop %v675
    %v684 = vrot.slane %v589, 7
    %v686 = vmul.f32 %v681, %v684
    %688 = vrot.lane.b32.xlu0 %v682, 64
    %v689 = vpop.permute.xlu0 %688
    %v691 = vmul.f32 %v681, %v689
    %693 = vrot.lane.b32.xlu0 %v691, 32
    %v694 = vpop.permute.xlu0 %693
    %v696 = vadd.f32 %v686, %v694
    %v697 = vtanh.pop %v696
    %699 = vrot.lane.b32.xlu0 %v697, 64
    %v700 = vpop.permute.xlu0 %699
    %v702 = vmul.f32 %v681, %v700
    %v704 = vrot.slane %v702, 3
    %705 = vrot.lane.b32.xlu0 %v704, 32
    %v706 = vpop.permute.xlu0 %705
    %v707 = vsel %vm284, %v706, 0
    %709 = vmatprep.subr.mxu0 0.0
    %710 = vmatpush1.msra.mxu0 %v196
    %711 = vmatprep.subr.mxu0 0.0
    %712 = vmatpush1.msra.mxu0 %v197
    %713 = vmatprep.subr.mxu0 0.0
    %714 = vmatpush1.msra.mxu0 %v198
    %715 = vmatprep.subr.mxu0 0.0
    %716 = vmatpush1.msra.mxu0 %v199
    %717 = vmatprep.subr.mxu0 0.0
    %718 = vmatpush1.msra.mxu0 0.0
    %719 = vmatprep.subr.mxu0 0.0
    %720 = vmatpush1.msra.mxu0 0.0
    %721 = vmatprep.subr.mxu0 0.0
    %722 = vmatpush1.msra.mxu0 0.0
    %723 = vmatprep.subr.mxu0 0.0
    %724 = vmatpush1.msra.mxu0 0.0
    %725 = vmatprep.subr.mxu0 0.0
    %726 = vmatpush1.msra.mxu0 0.0
    %727 = vmatprep.subr.mxu0 0.0
    %728 = vmatpush1.msra.mxu0 0.0
    %729 = vmatprep.subr.mxu0 0.0
    %730 = vmatpush1.msra.mxu0 0.0
    %731 = vmatprep.subr.mxu0 0.0
    %732 = vmatpush1.msra.mxu0 0.0
    %733 = vmatprep.subr.mxu0 0.0
    %734 = vmatpush1.msra.mxu0 0.0
    %735 = vmatprep.subr.mxu0 0.0
    %736 = vmatpush1.msra.mxu0 0.0
    %737 = vmatprep.subr.mxu0 0.0
    %738 = vmatpush1.msra.mxu0 0.0
    %739 = vmatprep.subr.mxu0 0.0
    %740 = vmatpush1.msra.mxu0 0.0
    %741 = vmatprep.subr.mxu0 0.0
    %742 = vmatpush1.msra.mxu0 0.0
    %743 = vmatprep.subr.mxu0 0.0
    %744 = vmatpush1.msra.mxu0 0.0
    %745 = vmatprep.subr.mxu0 0.0
    %746 = vmatpush1.msra.mxu0 0.0
    %747 = vmatprep.subr.mxu0 0.0
    %748 = vmatpush1.msra.mxu0 0.0
    %749 = vmatprep.subr.mxu0 0.0
    %750 = vmatpush1.msra.mxu0 0.0
    %751 = vmatprep.subr.mxu0 0.0
    %752 = vmatpush1.msra.mxu0 0.0
    %753 = vmatprep.subr.mxu0 0.0
    %754 = vmatpush1.msra.mxu0 0.0
    %755 = vmatprep.subr.mxu0 0.0
    %756 = vmatpush1.msra.mxu0 0.0
    %757 = vmatprep.subr.mxu0 0.0
    %758 = vmatpush1.msra.mxu0 0.0
    %759 = vmatprep.subr.mxu0 0.0
    %760 = vmatpush1.msra.mxu0 0.0
    %761 = vmatprep.subr.mxu0 0.0
    %762 = vmatpush1.msra.mxu0 0.0
    %763 = vmatprep.subr.mxu0 0.0
    %764 = vmatpush1.msra.mxu0 0.0
    %765 = vmatprep.subr.mxu0 0.0
    %766 = vmatpush1.msra.mxu0 0.0
    %767 = vmatprep.subr.mxu0 0.0
    %768 = vmatpush1.msra.mxu0 0.0
    %769 = vmatprep.subr.mxu0 0.0
    %770 = vmatpush1.msra.mxu0 0.0
    %771 = vmatprep.subr.mxu0 0.0
    %772 = vmatpush1.msra.mxu0 0.0
    %773 = vmatprep.mubr.f32.mxu0 0.0
    %774 = vmatmul.mubr.f32.gmra.mrb[0].mxu0 %v707
    %v775 = vpop.f32.mrb[0].mxu0
    %v776 = vadd.f32 0.0, %v775
    %v777 = vpop.f32.mrb[0].mxu0
    %778 = vdwg.mxu0
    %v780 = vrot.slane %v776, 4
    %v782 = vadd.f32 %v281, %v780
    %v783 = vxor.u32 %v782, 2147483648
    %v784 = vmul.f32 %v783, 1.442695
    %v785 = vpow.pop %v784
    %v786 = vadd.f32 %v785, 1.0
    %v787 = vrcp.pop %v786
    %v788 = vmul.f32 1.0, %v787
    %v789 = vtanh.pop %v782
    %v791 = vrot.slane %v696, 7
    %v793 = vmul.f32 %v788, %v791
    %795 = vrot.lane.b32.xlu0 %v789, 64
    %v796 = vpop.permute.xlu0 %795
    %v798 = vmul.f32 %v788, %v796
    %800 = vrot.lane.b32.xlu0 %v798, 32
    %v801 = vpop.permute.xlu0 %800
    %v803 = vadd.f32 %v793, %v801
    %v804 = vtanh.pop %v803
    %806 = vrot.lane.b32.xlu0 %v804, 64
    %v807 = vpop.permute.xlu0 %806
    %v809 = vmul.f32 %v788, %v807
    %v811 = vrot.slane %v809, 4
    %812 = vrot.lane.b32.xlu0 %v811, 32
    %v813 = vpop.permute.xlu0 %812
    %v814 = vsel %vm284, %v813, 0
    %816 = vmatprep.subr.mxu0 0.0
    %817 = vmatpush1.msra.mxu0 %v196
    %818 = vmatprep.subr.mxu0 0.0
    %819 = vmatpush1.msra.mxu0 %v197
    %820 = vmatprep.subr.mxu0 0.0
    %821 = vmatpush1.msra.mxu0 %v198
    %822 = vmatprep.subr.mxu0 0.0
    %823 = vmatpush1.msra.mxu0 %v199
    %824 = vmatprep.subr.mxu0 0.0
    %825 = vmatpush1.msra.mxu0 0.0
    %826 = vmatprep.subr.mxu0 0.0
    %827 = vmatpush1.msra.mxu0 0.0
    %828 = vmatprep.subr.mxu0 0.0
    %829 = vmatpush1.msra.mxu0 0.0
    %830 = vmatprep.subr.mxu0 0.0
    %831 = vmatpush1.msra.mxu0 0.0
    %832 = vmatprep.subr.mxu0 0.0
    %833 = vmatpush1.msra.mxu0 0.0
    %834 = vmatprep.subr.mxu0 0.0
    %835 = vmatpush1.msra.mxu0 0.0
    %836 = vmatprep.subr.mxu0 0.0
    %837 = vmatpush1.msra.mxu0 0.0
    %838 = vmatprep.subr.mxu0 0.0
    %839 = vmatpush1.msra.mxu0 0.0
    %840 = vmatprep.subr.mxu0 0.0
    %841 = vmatpush1.msra.mxu0 0.0
    %842 = vmatprep.subr.mxu0 0.0
    %843 = vmatpush1.msra.mxu0 0.0
    %844 = vmatprep.subr.mxu0 0.0
    %845 = vmatpush1.msra.mxu0 0.0
    %846 = vmatprep.subr.mxu0 0.0
    %847 = vmatpush1.msra.mxu0 0.0
    %848 = vmatprep.subr.mxu0 0.0
    %849 = vmatpush1.msra.mxu0 0.0
    %850 = vmatprep.subr.mxu0 0.0
    %851 = vmatpush1.msra.mxu0 0.0
    %852 = vmatprep.subr.mxu0 0.0
    %853 = vmatpush1.msra.mxu0 0.0
    %854 = vmatprep.subr.mxu0 0.0
    %855 = vmatpush1.msra.mxu0 0.0
    %856 = vmatprep.subr.mxu0 0.0
    %857 = vmatpush1.msra.mxu0 0.0
    %858 = vmatprep.subr.mxu0 0.0
    %859 = vmatpush1.msra.mxu0 0.0
    %860 = vmatprep.subr.mxu0 0.0
    %861 = vmatpush1.msra.mxu0 0.0
    %862 = vmatprep.subr.mxu0 0.0
    %863 = vmatpush1.msra.mxu0 0.0
    %864 = vmatprep.subr.mxu0 0.0
    %865 = vmatpush1.msra.mxu0 0.0
    %866 = vmatprep.subr.mxu0 0.0
    %867 = vmatpush1.msra.mxu0 0.0
    %868 = vmatprep.subr.mxu0 0.0
    %869 = vmatpush1.msra.mxu0 0.0
    %870 = vmatprep.subr.mxu0 0.0
    %871 = vmatpush1.msra.mxu0 0.0
    %872 = vmatprep.subr.mxu0 0.0
    %873 = vmatpush1.msra.mxu0 0.0
    %874 = vmatprep.subr.mxu0 0.0
    %875 = vmatpush1.msra.mxu0 0.0
    %876 = vmatprep.subr.mxu0 0.0
    %877 = vmatpush1.msra.mxu0 0.0
    %878 = vmatprep.subr.mxu0 0.0
    %879 = vmatpush1.msra.mxu0 0.0
    %880 = vmatprep.mubr.f32.mxu0 0.0
    %881 = vmatmul.mubr.f32.gmra.mrb[0].mxu0 %v814
    %v882 = vpop.f32.mrb[0].mxu0
    %v883 = vadd.f32 0.0, %v882
    %v884 = vpop.f32.mrb[0].mxu0
    %885 = vdwg.mxu0
    %v887 = vrot.slane %v883, 3
    %v889 = vadd.f32 %v281, %v887
    %v890 = vxor.u32 %v889, 2147483648
    %v891 = vmul.f32 %v890, 1.442695
    %v892 = vpow.pop %v891
    %v893 = vadd.f32 %v892, 1.0
    %v894 = vrcp.pop %v893
    %v895 = vmul.f32 1.0, %v894
    %v896 = vtanh.pop %v889
    %v898 = vrot.slane %v803, 7
    %v900 = vmul.f32 %v895, %v898
    %902 = vrot.lane.b32.xlu0 %v896, 64
    %v903 = vpop.permute.xlu0 %902
    %v905 = vmul.f32 %v895, %v903
    %907 = vrot.lane.b32.xlu0 %v905, 32
    %v908 = vpop.permute.xlu0 %907
    %v910 = vadd.f32 %v900, %v908
    %v911 = vtanh.pop %v910
    %913 = vrot.lane.b32.xlu0 %v911, 64
    %v914 = vpop.permute.xlu0 %913
    %v916 = vmul.f32 %v895, %v914
    %v918 = vrot.slane %v916, 5
    %919 = vrot.lane.b32.xlu0 %v918, 32
    %v920 = vpop.permute.xlu0 %919
    %v921 = vsel %vm284, %v920, 0
    %923 = vmatprep.subr.mxu0 0.0
    %924 = vmatpush1.msra.mxu0 %v196
    %925 = vmatprep.subr.mxu0 0.0
    %926 = vmatpush1.msra.mxu0 %v197
    %927 = vmatprep.subr.mxu0 0.0
    %928 = vmatpush1.msra.mxu0 %v198
    %929 = vmatprep.subr.mxu0 0.0
    %930 = vmatpush1.msra.mxu0 %v199
    %931 = vmatprep.subr.mxu0 0.0
    %932 = vmatpush1.msra.mxu0 0.0
    %933 = vmatprep.subr.mxu0 0.0
    %934 = vmatpush1.msra.mxu0 0.0
    %935 = vmatprep.subr.mxu0 0.0
    %936 = vmatpush1.msra.mxu0 0.0
    %937 = vmatprep.subr.mxu0 0.0
    %938 = vmatpush1.msra.mxu0 0.0
    %939 = vmatprep.subr.mxu0 0.0
    %940 = vmatpush1.msra.mxu0 0.0
    %941 = vmatprep.subr.mxu0 0.0
    %942 = vmatpush1.msra.mxu0 0.0
    %943 = vmatprep.subr.mxu0 0.0
    %944 = vmatpush1.msra.mxu0 0.0
    %945 = vmatprep.subr.mxu0 0.0
    %946 = vmatpush1.msra.mxu0 0.0
    %947 = vmatprep.subr.mxu0 0.0
    %948 = vmatpush1.msra.mxu0 0.0
    %949 = vmatprep.subr.mxu0 0.0
    %950 = vmatpush1.msra.mxu0 0.0
    %951 = vmatprep.subr.mxu0 0.0
    %952 = vmatpush1.msra.mxu0 0.0
    %953 = vmatprep.subr.mxu0 0.0
    %954 = vmatpush1.msra.mxu0 0.0
    %955 = vmatprep.subr.mxu0 0.0
    %956 = vmatpush1.msra.mxu0 0.0
    %957 = vmatprep.subr.mxu0 0.0
    %958 = vmatpush1.msra.mxu0 0.0
    %959 = vmatprep.subr.mxu0 0.0
    %960 = vmatpush1.msra.mxu0 0.0
    %961 = vmatprep.subr.mxu0 0.0
    %962 = vmatpush1.msra.mxu0 0.0
    %963 = vmatprep.subr.mxu0 0.0
    %964 = vmatpush1.msra.mxu0 0.0
    %965 = vmatprep.subr.mxu0 0.0
    %966 = vmatpush1.msra.mxu0 0.0
    %967 = vmatprep.subr.mxu0 0.0
    %968 = vmatpush1.msra.mxu0 0.0
    %969 = vmatprep.subr.mxu0 0.0
    %970 = vmatpush1.msra.mxu0 0.0
    %971 = vmatprep.subr.mxu0 0.0
    %972 = vmatpush1.msra.mxu0 0.0
    %973 = vmatprep.subr.mxu0 0.0
    %974 = vmatpush1.msra.mxu0 0.0
    %975 = vmatprep.subr.mxu0 0.0
    %976 = vmatpush1.msra.mxu0 0.0
    %977 = vmatprep.subr.mxu0 0.0
    %978 = vmatpush1.msra.mxu0 0.0
    %979 = vmatprep.subr.mxu0 0.0
    %980 = vmatpush1.msra.mxu0 0.0
    %981 = vmatprep.subr.mxu0 0.0
    %982 = vmatpush1.msra.mxu0 0.0
    %983 = vmatprep.subr.mxu0 0.0
    %984 = vmatpush1.msra.mxu0 0.0
    %985 = vmatprep.subr.mxu0 0.0
    %986 = vmatpush1.msra.mxu0 0.0
    %987 = vmatprep.mubr.f32.mxu0 0.0
    %988 = vmatmul.mubr.f32.gmra.mrb[0].mxu0 %v921
    %v989 = vpop.f32.mrb[0].mxu0
    %v990 = vadd.f32 0.0, %v989
    %v991 = vpop.f32.mrb[0].mxu0
    %992 = vdwg.mxu0
    %v994 = vrot.slane %v990, 2
    %v996 = vadd.f32 %v281, %v994
    %v997 = vxor.u32 %v996, 2147483648
    %v998 = vmul.f32 %v997, 1.442695
    %v999 = vpow.pop %v998
    %v1000 = vadd.f32 %v999, 1.0
    %v1001 = vrcp.pop %v1000
    %v1002 = vmul.f32 1.0, %v1001
    %v1003 = vtanh.pop %v996
    %v1005 = vrot.slane %v910, 7
    %v1007 = vmul.f32 %v1002, %v1005
    %1009 = vrot.lane.b32.xlu0 %v1003, 64
    %v1010 = vpop.permute.xlu0 %1009
    %v1012 = vmul.f32 %v1002, %v1010
    %1014 = vrot.lane.b32.xlu0 %v1012, 32
    %v1015 = vpop.permute.xlu0 %1014
    %v1017 = vadd.f32 %v1007, %v1015
    %v1018 = vtanh.pop %v1017
    %1020 = vrot.lane.b32.xlu0 %v1018, 64
    %v1021 = vpop.permute.xlu0 %1020
    %v1023 = vmul.f32 %v1002, %v1021
    %v1025 = vrot.slane %v1023, 6
    %1026 = vrot.lane.b32.xlu0 %v1025, 32
    %v1027 = vpop.permute.xlu0 %1026
    %v1028 = vsel %vm284, %v1027, 0
    %1030 = vmatprep.subr.mxu0 0.0
    %1031 = vmatpush1.msra.mxu0 %v196
    %1032 = vmatprep.subr.mxu0 0.0
    %1033 = vmatpush1.msra.mxu0 %v197
    %1034 = vmatprep.subr.mxu0 0.0
    %1035 = vmatpush1.msra.mxu0 %v198
    %1036 = vmatprep.subr.mxu0 0.0
    %1037 = vmatpush1.msra.mxu0 %v199
    %1038 = vmatprep.subr.mxu0 0.0
    %1039 = vmatpush1.msra.mxu0 0.0
    %1040 = vmatprep.subr.mxu0 0.0
    %1041 = vmatpush1.msra.mxu0 0.0
    %1042 = vmatprep.subr.mxu0 0.0
    %1043 = vmatpush1.msra.mxu0 0.0
    %1044 = vmatprep.subr.mxu0 0.0
    %1045 = vmatpush1.msra.mxu0 0.0
    %1046 = vmatprep.subr.mxu0 0.0
    %1047 = vmatpush1.msra.mxu0 0.0
    %1048 = vmatprep.subr.mxu0 0.0
    %1049 = vmatpush1.msra.mxu0 0.0
    %1050 = vmatprep.subr.mxu0 0.0
    %1051 = vmatpush1.msra.mxu0 0.0
    %1052 = vmatprep.subr.mxu0 0.0
    %1053 = vmatpush1.msra.mxu0 0.0
    %1054 = vmatprep.subr.mxu0 0.0
    %1055 = vmatpush1.msra.mxu0 0.0
    %1056 = vmatprep.subr.mxu0 0.0
    %1057 = vmatpush1.msra.mxu0 0.0
    %1058 = vmatprep.subr.mxu0 0.0
    %1059 = vmatpush1.msra.mxu0 0.0
    %1060 = vmatprep.subr.mxu0 0.0
    %1061 = vmatpush1.msra.mxu0 0.0
    %1062 = vmatprep.subr.mxu0 0.0
    %1063 = vmatpush1.msra.mxu0 0.0
    %1064 = vmatprep.subr.mxu0 0.0
    %1065 = vmatpush1.msra.mxu0 0.0
    %1066 = vmatprep.subr.mxu0 0.0
    %1067 = vmatpush1.msra.mxu0 0.0
    %1068 = vmatprep.subr.mxu0 0.0
    %1069 = vmatpush1.msra.mxu0 0.0
    %1070 = vmatprep.subr.mxu0 0.0
    %1071 = vmatpush1.msra.mxu0 0.0
    %1072 = vmatprep.subr.mxu0 0.0
    %1073 = vmatpush1.msra.mxu0 0.0
    %1074 = vmatprep.subr.mxu0 0.0
    %1075 = vmatpush1.msra.mxu0 0.0
    %1076 = vmatprep.subr.mxu0 0.0
    %1077 = vmatpush1.msra.mxu0 0.0
    %1078 = vmatprep.subr.mxu0 0.0
    %1079 = vmatpush1.msra.mxu0 0.0
    %1080 = vmatprep.subr.mxu0 0.0
    %1081 = vmatpush1.msra.mxu0 0.0
    %1082 = vmatprep.subr.mxu0 0.0
    %1083 = vmatpush1.msra.mxu0 0.0
    %1084 = vmatprep.subr.mxu0 0.0
    %1085 = vmatpush1.msra.mxu0 0.0
    %1086 = vmatprep.subr.mxu0 0.0
    %1087 = vmatpush1.msra.mxu0 0.0
    %1088 = vmatprep.subr.mxu0 0.0
    %1089 = vmatpush1.msra.mxu0 0.0
    %1090 = vmatprep.subr.mxu0 0.0
    %1091 = vmatpush1.msra.mxu0 0.0
    %1092 = vmatprep.subr.mxu0 0.0
    %1093 = vmatpush1.msra.mxu0 0.0
    %1094 = vmatprep.mubr.f32.mxu0 0.0
    %1095 = vmatmul.mubr.f32.gmra.mrb[0].mxu0 %v1028
    %v1096 = vpop.f32.mrb[0].mxu0
    %v1097 = vadd.f32 0.0, %v1096
    %v1098 = vpop.f32.mrb[0].mxu0
    %1099 = vdwg.mxu0
    %v1101 = vrot.slane %v1097, 1
    %v1103 = vadd.f32 %v281, %v1101
    %v1104 = vxor.u32 %v1103, 2147483648
    %v1105 = vmul.f32 %v1104, 1.442695
    %v1106 = vpow.pop %v1105
    %v1107 = vadd.f32 %v1106, 1.0
    %v1108 = vrcp.pop %v1107
    %v1109 = vmul.f32 1.0, %v1108
    %v1110 = vtanh.pop %v1103
    %v1112 = vrot.slane %v1017, 7
    %v1114 = vmul.f32 %v1109, %v1112
    %1116 = vrot.lane.b32.xlu0 %v1110, 64
    %v1117 = vpop.permute.xlu0 %1116
    %v1119 = vmul.f32 %v1109, %v1117
    %1121 = vrot.lane.b32.xlu0 %v1119, 32
    %v1122 = vpop.permute.xlu0 %1121
    %v1124 = vadd.f32 %v1114, %v1122
    %v1125 = vtanh.pop %v1124
    %1127 = vrot.lane.b32.xlu0 %v1125, 64
    %v1128 = vpop.permute.xlu0 %1127
    %v1130 = vmul.f32 %v1109, %v1128
    %vm1131 = vcmask 1040384
    %v1132 = vsel %vm1131, %v382, %v488
    %vm1133 = vcmask 1041408
    %v1134 = vsel %vm1133, %v1132, %v595
    %vm1135 = vcmask 1042432
    %v1136 = vsel %vm1135, %v1134, %v702
    %vm1137 = vcmask 1043456
    %v1138 = vsel %vm1137, %v1136, %v809
    %vm1139 = vcmask 1044480
    %v1140 = vsel %vm1139, %v1138, %v916
    %vm1141 = vcmask 1045504
    %v1142 = vsel %vm1141, %v1140, %v1023
    %vm1143 = vcmask 1046528
    %v1144 = vsel %vm1143, %v1142, %v1130
    %v1145 = vlaneseq
    %v1146 = vshrl.u32 %v1145, 7
    %s1147 = sld [smem:[#allocation21]]
    %v1148 = vstv %s1147
    %vm1149 = vcmp.eq.s32.totalorder %v1146, %v1148
    %v1150 = vsel %vm1149, 1, 0
    %vm1151 = vcmp.eq.s32.totalorder %v1150, 1
    %v1152 = vsel %vm1151, %v1144, 0.0
    %vm1153 = vcmask 1048320
    %v1154 = vsel %vm1153, %v1152, 0.0
    %v1155 = vrot.slane %v1154, 4
    %v1156 = vadd.f32 %v1154, %v1155
    %v1157 = vrot.slane %v1156, 2
    %v1158 = vadd.f32 %v1156, %v1157
    %v1159 = vrot.slane %v1158, 1
    %v1160 = vadd.f32 %v1158, %v1159
    %s1161 = sld [smem:[#allocation21 + $0x1]]
    %v1162 = vstv %s1161
    %vm1163 = vcmp.eq.s32.totalorder %v1146, %v1162
    %v1164 = vsel %vm1163, 1, 0
    %vm1165 = vcmp.eq.s32.totalorder %v1164, 1
    %v1166 = vsel %vm1165, %v1144, 0.0
    %v1167 = vsel %vm1153, %v1166, 0.0
    %v1168 = vrot.slane %v1167, 4
    %v1169 = vadd.f32 %v1167, %v1168
    %v1170 = vrot.slane %v1169, 2
    %v1171 = vadd.f32 %v1169, %v1170
    %v1172 = vrot.slane %v1171, 1
    %v1173 = vadd.f32 %v1171, %v1172
    %s1174 = sld [smem:[#allocation21 + $0x2]]
    %v1175 = vstv %s1174
    %vm1176 = vcmp.eq.s32.totalorder %v1146, %v1175
    %v1177 = vsel %vm1176, 1, 0
    %vm1178 = vcmp.eq.s32.totalorder %v1177, 1
    %v1179 = vsel %vm1178, %v1144, 0.0
    %v1180 = vsel %vm1153, %v1179, 0.0
    %v1181 = vrot.slane %v1180, 4
    %v1182 = vadd.f32 %v1180, %v1181
    %v1183 = vrot.slane %v1182, 2
    %v1184 = vadd.f32 %v1182, %v1183
    %v1185 = vrot.slane %v1184, 1
    %v1186 = vadd.f32 %v1184, %v1185
    %s1187 = sld [smem:[#allocation21 + $0x3]]
    %v1188 = vstv %s1187
    %vm1189 = vcmp.eq.s32.totalorder %v1146, %v1188
    %v1190 = vsel %vm1189, 1, 0
    %vm1191 = vcmp.eq.s32.totalorder %v1190, 1
    %v1192 = vsel %vm1191, %v1144, 0.0
    %v1193 = vsel %vm1153, %v1192, 0.0
    %v1194 = vrot.slane %v1193, 4
    %v1195 = vadd.f32 %v1193, %v1194
    %v1196 = vrot.slane %v1195, 2
    %v1197 = vadd.f32 %v1195, %v1196
    %v1198 = vrot.slane %v1197, 1
    %v1199 = vadd.f32 %v1197, %v1198
    %v1200 = vsel %vm1131, %v1160, %v1173
    %v1201 = vsel %vm1133, %v1200, %v1186
    %v1202 = vsel %vm1135, %v1201, %v1199
    %v1203 = vld [vmem:[#allocation11] sm:$0xff]
    %v1204 = vld [vmem:[#allocation11 + $0x8] sm:$0xff]
    %v1205 = vld [vmem:[#allocation11 + $0x10] sm:$0xff]
    %v1206 = vld [vmem:[#allocation11 + $0x18] sm:$0xff]
    %v1207 = vld [vmem:[%s4] sm:$0xf]
    %v1208 = vld [vmem:[#allocation9] sm:$0x1]
    %1210 = vset.pattern.permute.xlu0 0
    %1211 = vperm.xlu0 %1210, %v1207
    %v1212 = vpop.permute.xlu0 %1211
    %v1215 = vlaneseq
    %v1216 = vshrl.u32 %v1215, 7
    %v1217 = vsub.s32 0, %v1216
    %v1218 = vrot.slane %v1208, %v1217
    %v1220 = vmul.f32 %v1212, %v1218
    %v1221 = vld [vmem:[#allocation12] sm:$0x1]
    %v1223 = vlaneseq
    %v1224 = vshrl.u32 %v1223, 7
    %v1225 = vsub.s32 0, %v1224
    %v1226 = vrot.slane %v1221, %v1225
    %v1228 = vadd.f32 %v1220, %v1226
    %1229 = vmatprep.subr.mxu0 0.0
    %1230 = vmatpush1.msra.mxu0 %v1203
    %1231 = vmatprep.subr.mxu0 0.0
    %1232 = vmatpush1.msra.mxu0 %v1204
    %1233 = vmatprep.subr.mxu0 0.0
    %1234 = vmatpush1.msra.mxu0 %v1205
    %1235 = vmatprep.subr.mxu0 0.0
    %1236 = vmatpush1.msra.mxu0 %v1206
    %1237 = vmatprep.subr.mxu0 0.0
    %1238 = vmatpush1.msra.mxu0 0.0
    %1239 = vmatprep.subr.mxu0 0.0
    %1240 = vmatpush1.msra.mxu0 0.0
    %1241 = vmatprep.subr.mxu0 0.0
    %1242 = vmatpush1.msra.mxu0 0.0
    %1243 = vmatprep.subr.mxu0 0.0
    %1244 = vmatpush1.msra.mxu0 0.0
    %1245 = vmatprep.subr.mxu0 0.0
    %1246 = vmatpush1.msra.mxu0 0.0
    %1247 = vmatprep.subr.mxu0 0.0
    %1248 = vmatpush1.msra.mxu0 0.0
    %1249 = vmatprep.subr.mxu0 0.0
    %1250 = vmatpush1.msra.mxu0 0.0
    %1251 = vmatprep.subr.mxu0 0.0
    %1252 = vmatpush1.msra.mxu0 0.0
    %1253 = vmatprep.subr.mxu0 0.0
    %1254 = vmatpush1.msra.mxu0 0.0
    %1255 = vmatprep.subr.mxu0 0.0
    %1256 = vmatpush1.msra.mxu0 0.0
    %1257 = vmatprep.subr.mxu0 0.0
    %1258 = vmatpush1.msra.mxu0 0.0
    %1259 = vmatprep.subr.mxu0 0.0
    %1260 = vmatpush1.msra.mxu0 0.0
    %1261 = vmatprep.subr.mxu0 0.0
    %1262 = vmatpush1.msra.mxu0 0.0
    %1263 = vmatprep.subr.mxu0 0.0
    %1264 = vmatpush1.msra.mxu0 0.0
    %1265 = vmatprep.subr.mxu0 0.0
    %1266 = vmatpush1.msra.mxu0 0.0
    %1267 = vmatprep.subr.mxu0 0.0
    %1268 = vmatpush1.msra.mxu0 0.0
    %1269 = vmatprep.subr.mxu0 0.0
    %1270 = vmatpush1.msra.mxu0 0.0
    %1271 = vmatprep.subr.mxu0 0.0
    %1272 = vmatpush1.msra.mxu0 0.0
    %1273 = vmatprep.subr.mxu0 0.0
    %1274 = vmatpush1.msra.mxu0 0.0
    %1275 = vmatprep.subr.mxu0 0.0
    %1276 = vmatpush1.msra.mxu0 0.0
    %1277 = vmatprep.subr.mxu0 0.0
    %1278 = vmatpush1.msra.mxu0 0.0
    %1279 = vmatprep.subr.mxu0 0.0
    %1280 = vmatpush1.msra.mxu0 0.0
    %1281 = vmatprep.subr.mxu0 0.0
    %1282 = vmatpush1.msra.mxu0 0.0
    %1283 = vmatprep.subr.mxu0 0.0
    %1284 = vmatpush1.msra.mxu0 0.0
    %1285 = vmatprep.subr.mxu0 0.0
    %1286 = vmatpush1.msra.mxu0 0.0
    %1287 = vmatprep.subr.mxu0 0.0
    %1288 = vmatpush1.msra.mxu0 0.0
    %1289 = vmatprep.subr.mxu0 0.0
    %1290 = vmatpush1.msra.mxu0 0.0
    %1291 = vmatprep.subr.mxu0 0.0
    %1292 = vmatpush1.msra.mxu0 0.0
    %1293 = vmatprep.mubr.f32.mxu0 0.0
    %1294 = vmatmul.mubr.f32.gmra.mrb[0].mxu0 %v286
    %v1295 = vpop.f32.mrb[0].mxu0
    %v1296 = vadd.f32 0.0, %v1295
    %v1297 = vpop.f32.mrb[0].mxu0
    %1298 = vdwg.mxu0
    %v1299 = vadd.f32 %v1228, %v1296
    %v1300 = vxor.u32 %v1299, 2147483648
    %v1301 = vmul.f32 %v1300, 1.442695
    %v1302 = vpow.pop %v1301
    %v1303 = vadd.f32 %v1302, 1.0
    %v1304 = vrcp.pop %v1303
    %v1305 = vmul.f32 1.0, %v1304
    %v1306 = vtanh.pop %v1299
    %v1307 = vmul.f32 %v1305, 0.0
    %1309 = vrot.lane.b32.xlu0 %v1306, 64
    %v1310 = vpop.permute.xlu0 %1309
    %v1312 = vmul.f32 %v1305, %v1310
    %1314 = vrot.lane.b32.xlu0 %v1312, 32
    %v1315 = vpop.permute.xlu0 %1314
    %v1317 = vadd.f32 %v1307, %v1315
    %v1318 = vtanh.pop %v1317
    %1320 = vrot.lane.b32.xlu0 %v1318, 64
    %v1321 = vpop.permute.xlu0 %1320
    %v1323 = vmul.f32 %v1305, %v1321
    %1325 = vrot.lane.b32.xlu0 %v1323, 32
    %v1326 = vpop.permute.xlu0 %1325
    %v1327 = vsel %vm284, %v1326, 0
    %1329 = vmatprep.subr.mxu0 0.0
    %1330 = vmatpush1.msra.mxu0 %v1203
    %1331 = vmatprep.subr.mxu0 0.0
    %1332 = vmatpush1.msra.mxu0 %v1204
    %1333 = vmatprep.subr.mxu0 0.0
    %1334 = vmatpush1.msra.mxu0 %v1205
    %1335 = vmatprep.subr.mxu0 0.0
    %1336 = vmatpush1.msra.mxu0 %v1206
    %1337 = vmatprep.subr.mxu0 0.0
    %1338 = vmatpush1.msra.mxu0 0.0
    %1339 = vmatprep.subr.mxu0 0.0
    %1340 = vmatpush1.msra.mxu0 0.0
    %1341 = vmatprep.subr.mxu0 0.0
    %1342 = vmatpush1.msra.mxu0 0.0
    %1343 = vmatprep.subr.mxu0 0.0
    %1344 = vmatpush1.msra.mxu0 0.0
    %1345 = vmatprep.subr.mxu0 0.0
    %1346 = vmatpush1.msra.mxu0 0.0
    %1347 = vmatprep.subr.mxu0 0.0
    %1348 = vmatpush1.msra.mxu0 0.0
    %1349 = vmatprep.subr.mxu0 0.0
    %1350 = vmatpush1.msra.mxu0 0.0
    %1351 = vmatprep.subr.mxu0 0.0
    %1352 = vmatpush1.msra.mxu0 0.0
    %1353 = vmatprep.subr.mxu0 0.0
    %1354 = vmatpush1.msra.mxu0 0.0
    %1355 = vmatprep.subr.mxu0 0.0
    %1356 = vmatpush1.msra.mxu0 0.0
    %1357 = vmatprep.subr.mxu0 0.0
    %1358 = vmatpush1.msra.mxu0 0.0
    %1359 = vmatprep.subr.mxu0 0.0
    %1360 = vmatpush1.msra.mxu0 0.0
    %1361 = vmatprep.subr.mxu0 0.0
    %1362 = vmatpush1.msra.mxu0 0.0
    %1363 = vmatprep.subr.mxu0 0.0
    %1364 = vmatpush1.msra.mxu0 0.0
    %1365 = vmatprep.subr.mxu0 0.0
    %1366 = vmatpush1.msra.mxu0 0.0
    %1367 = vmatprep.subr.mxu0 0.0
    %1368 = vmatpush1.msra.mxu0 0.0
    %1369 = vmatprep.subr.mxu0 0.0
    %1370 = vmatpush1.msra.mxu0 0.0
    %1371 = vmatprep.subr.mxu0 0.0
    %1372 = vmatpush1.msra.mxu0 0.0
    %1373 = vmatprep.subr.mxu0 0.0
    %1374 = vmatpush1.msra.mxu0 0.0
    %1375 = vmatprep.subr.mxu0 0.0
    %1376 = vmatpush1.msra.mxu0 0.0
    %1377 = vmatprep.subr.mxu0 0.0
    %1378 = vmatpush1.msra.mxu0 0.0
    %1379 = vmatprep.subr.mxu0 0.0
    %1380 = vmatpush1.msra.mxu0 0.0
    %1381 = vmatprep.subr.mxu0 0.0
    %1382 = vmatpush1.msra.mxu0 0.0
    %1383 = vmatprep.subr.mxu0 0.0
    %1384 = vmatpush1.msra.mxu0 0.0
    %1385 = vmatprep.subr.mxu0 0.0
    %1386 = vmatpush1.msra.mxu0 0.0
    %1387 = vmatprep.subr.mxu0 0.0
    %1388 = vmatpush1.msra.mxu0 0.0
    %1389 = vmatprep.subr.mxu0 0.0
    %1390 = vmatpush1.msra.mxu0 0.0
    %1391 = vmatprep.subr.mxu0 0.0
    %1392 = vmatpush1.msra.mxu0 0.0
    %1393 = vmatprep.mubr.f32.mxu0 0.0
    %1394 = vmatmul.mubr.f32.gmra.mrb[0].mxu0 %v1327
    %v1395 = vpop.f32.mrb[0].mxu0
    %v1396 = vadd.f32 0.0, %v1395
    %v1397 = vpop.f32.mrb[0].mxu0
    %1398 = vdwg.mxu0
    %v1400 = vrot.slane %v1396, 7
    %v1402 = vadd.f32 %v1228, %v1400
    %v1403 = vxor.u32 %v1402, 2147483648
    %v1404 = vmul.f32 %v1403, 1.442695
    %v1405 = vpow.pop %v1404
    %v1406 = vadd.f32 %v1405, 1.0
    %v1407 = vrcp.pop %v1406
    %v1408 = vmul.f32 1.0, %v1407
    %v1409 = vtanh.pop %v1402
    %v1411 = vrot.slane %v1317, 7
    %v1413 = vmul.f32 %v1408, %v1411
    %1415 = vrot.lane.b32.xlu0 %v1409, 64
    %v1416 = vpop.permute.xlu0 %1415
    %v1418 = vmul.f32 %v1408, %v1416
    %1420 = vrot.lane.b32.xlu0 %v1418, 32
    %v1421 = vpop.permute.xlu0 %1420
    %v1423 = vadd.f32 %v1413, %v1421
    %v1424 = vtanh.pop %v1423
    %1426 = vrot.lane.b32.xlu0 %v1424, 64
    %v1427 = vpop.permute.xlu0 %1426
    %v1429 = vmul.f32 %v1408, %v1427
    %v1431 = vrot.slane %v1429, 1
    %1432 = vrot.lane.b32.xlu0 %v1431, 32
    %v1433 = vpop.permute.xlu0 %1432
    %v1434 = vsel %vm284, %v1433, 0
    %1436 = vmatprep.subr.mxu0 0.0
    %1437 = vmatpush1.msra.mxu0 %v1203
    %1438 = vmatprep.subr.mxu0 0.0
    %1439 = vmatpush1.msra.mxu0 %v1204
    %1440 = vmatprep.subr.mxu0 0.0
    %1441 = vmatpush1.msra.mxu0 %v1205
    %1442 = vmatprep.subr.mxu0 0.0
    %1443 = vmatpush1.msra.mxu0 %v1206
    %1444 = vmatprep.subr.mxu0 0.0
    %1445 = vmatpush1.msra.mxu0 0.0
    %1446 = vmatprep.subr.mxu0 0.0
    %1447 = vmatpush1.msra.mxu0 0.0
    %1448 = vmatprep.subr.mxu0 0.0
    %1449 = vmatpush1.msra.mxu0 0.0
    %1450 = vmatprep.subr.mxu0 0.0
    %1451 = vmatpush1.msra.mxu0 0.0
    %1452 = vmatprep.subr.mxu0 0.0
    %1453 = vmatpush1.msra.mxu0 0.0
    %1454 = vmatprep.subr.mxu0 0.0
    %1455 = vmatpush1.msra.mxu0 0.0
    %1456 = vmatprep.subr.mxu0 0.0
    %1457 = vmatpush1.msra.mxu0 0.0
    %1458 = vmatprep.subr.mxu0 0.0
    %1459 = vmatpush1.msra.mxu0 0.0
    %1460 = vmatprep.subr.mxu0 0.0
    %1461 = vmatpush1.msra.mxu0 0.0
    %1462 = vmatprep.subr.mxu0 0.0
    %1463 = vmatpush1.msra.mxu0 0.0
    %1464 = vmatprep.subr.mxu0 0.0
    %1465 = vmatpush1.msra.mxu0 0.0
    %1466 = vmatprep.subr.mxu0 0.0
    %1467 = vmatpush1.msra.mxu0 0.0
    %1468 = vmatprep.subr.mxu0 0.0
    %1469 = vmatpush1.msra.mxu0 0.0
    %1470 = vmatprep.subr.mxu0 0.0
    %1471 = vmatpush1.msra.mxu0 0.0
    %1472 = vmatprep.subr.mxu0 0.0
    %1473 = vmatpush1.msra.mxu0 0.0
    %1474 = vmatprep.subr.mxu0 0.0
    %1475 = vmatpush1.msra.mxu0 0.0
    %1476 = vmatprep.subr.mxu0 0.0
    %1477 = vmatpush1.msra.mxu0 0.0
    %1478 = vmatprep.subr.mxu0 0.0
    %1479 = vmatpush1.msra.mxu0 0.0
    %1480 = vmatprep.subr.mxu0 0.0
    %1481 = vmatpush1.msra.mxu0 0.0
    %1482 = vmatprep.subr.mxu0 0.0
    %1483 = vmatpush1.msra.mxu0 0.0
    %1484 = vmatprep.subr.mxu0 0.0
    %1485 = vmatpush1.msra.mxu0 0.0
    %1486 = vmatprep.subr.mxu0 0.0
    %1487 = vmatpush1.msra.mxu0 0.0
    %1488 = vmatprep.subr.mxu0 0.0
    %1489 = vmatpush1.msra.mxu0 0.0
    %1490 = vmatprep.subr.mxu0 0.0
    %1491 = vmatpush1.msra.mxu0 0.0
    %1492 = vmatprep.subr.mxu0 0.0
    %1493 = vmatpush1.msra.mxu0 0.0
    %1494 = vmatprep.subr.mxu0 0.0
    %1495 = vmatpush1.msra.mxu0 0.0
    %1496 = vmatprep.subr.mxu0 0.0
    %1497 = vmatpush1.msra.mxu0 0.0
    %1498 = vmatprep.subr.mxu0 0.0
    %1499 = vmatpush1.msra.mxu0 0.0
    %1500 = vmatprep.mubr.f32.mxu0 0.0
    %1501 = vmatmul.mubr.f32.gmra.mrb[0].mxu0 %v1434
    %v1502 = vpop.f32.mrb[0].mxu0
    %v1503 = vadd.f32 0.0, %v1502
    %v1504 = vpop.f32.mrb[0].mxu0
    %1505 = vdwg.mxu0
    %v1507 = vrot.slane %v1503, 6
    %v1509 = vadd.f32 %v1228, %v1507
    %v1510 = vxor.u32 %v1509, 2147483648
    %v1511 = vmul.f32 %v1510, 1.442695
    %v1512 = vpow.pop %v1511
    %v1513 = vadd.f32 %v1512, 1.0
    %v1514 = vrcp.pop %v1513
    %v1515 = vmul.f32 1.0, %v1514
    %v1516 = vtanh.pop %v1509
    %v1518 = vrot.slane %v1423, 7
    %v1520 = vmul.f32 %v1515, %v1518
    %1522 = vrot.lane.b32.xlu0 %v1516, 64
    %v1523 = vpop.permute.xlu0 %1522
    %v1525 = vmul.f32 %v1515, %v1523
    %1527 = vrot.lane.b32.xlu0 %v1525, 32
    %v1528 = vpop.permute.xlu0 %1527
    %v1530 = vadd.f32 %v1520, %v1528
    %v1531 = vtanh.pop %v1530
    %1533 = vrot.lane.b32.xlu0 %v1531, 64
    %v1534 = vpop.permute.xlu0 %1533
    %v1536 = vmul.f32 %v1515, %v1534
    %v1538 = vrot.slane %v1536, 2
    %1539 = vrot.lane.b32.xlu0 %v1538, 32
    %v1540 = vpop.permute.xlu0 %1539
    %v1541 = vsel %vm284, %v1540, 0
    %1543 = vmatprep.subr.mxu0 0.0
    %1544 = vmatpush1.msra.mxu0 %v1203
    %1545 = vmatprep.subr.mxu0 0.0
    %1546 = vmatpush1.msra.mxu0 %v1204
    %1547 = vmatprep.subr.mxu0 0.0
    %1548 = vmatpush1.msra.mxu0 %v1205
    %1549 = vmatprep.subr.mxu0 0.0
    %1550 = vmatpush1.msra.mxu0 %v1206
    %1551 = vmatprep.subr.mxu0 0.0
    %1552 = vmatpush1.msra.mxu0 0.0
    %1553 = vmatprep.subr.mxu0 0.0
    %1554 = vmatpush1.msra.mxu0 0.0
    %1555 = vmatprep.subr.mxu0 0.0
    %1556 = vmatpush1.msra.mxu0 0.0
    %1557 = vmatprep.subr.mxu0 0.0
    %1558 = vmatpush1.msra.mxu0 0.0
    %1559 = vmatprep.subr.mxu0 0.0
    %1560 = vmatpush1.msra.mxu0 0.0
    %1561 = vmatprep.subr.mxu0 0.0
    %1562 = vmatpush1.msra.mxu0 0.0
    %1563 = vmatprep.subr.mxu0 0.0
    %1564 = vmatpush1.msra.mxu0 0.0
    %1565 = vmatprep.subr.mxu0 0.0
    %1566 = vmatpush1.msra.mxu0 0.0
    %1567 = vmatprep.subr.mxu0 0.0
    %1568 = vmatpush1.msra.mxu0 0.0
    %1569 = vmatprep.subr.mxu0 0.0
    %1570 = vmatpush1.msra.mxu0 0.0
    %1571 = vmatprep.subr.mxu0 0.0
    %1572 = vmatpush1.msra.mxu0 0.0
    %1573 = vmatprep.subr.mxu0 0.0
    %1574 = vmatpush1.msra.mxu0 0.0
    %1575 = vmatprep.subr.mxu0 0.0
    %1576 = vmatpush1.msra.mxu0 0.0
    %1577 = vmatprep.subr.mxu0 0.0
    %1578 = vmatpush1.msra.mxu0 0.0
    %1579 = vmatprep.subr.mxu0 0.0
    %1580 = vmatpush1.msra.mxu0 0.0
    %1581 = vmatprep.subr.mxu0 0.0
    %1582 = vmatpush1.msra.mxu0 0.0
    %1583 = vmatprep.subr.mxu0 0.0
    %1584 = vmatpush1.msra.mxu0 0.0
    %1585 = vmatprep.subr.mxu0 0.0
    %1586 = vmatpush1.msra.mxu0 0.0
    %1587 = vmatprep.subr.mxu0 0.0
    %1588 = vmatpush1.msra.mxu0 0.0
    %1589 = vmatprep.subr.mxu0 0.0
    %1590 = vmatpush1.msra.mxu0 0.0
    %1591 = vmatprep.subr.mxu0 0.0
    %1592 = vmatpush1.msra.mxu0 0.0
    %1593 = vmatprep.subr.mxu0 0.0
    %1594 = vmatpush1.msra.mxu0 0.0
    %1595 = vmatprep.subr.mxu0 0.0
    %1596 = vmatpush1.msra.mxu0 0.0
    %1597 = vmatprep.subr.mxu0 0.0
    %1598 = vmatpush1.msra.mxu0 0.0
    %1599 = vmatprep.subr.mxu0 0.0
    %1600 = vmatpush1.msra.mxu0 0.0
    %1601 = vmatprep.subr.mxu0 0.0
    %1602 = vmatpush1.msra.mxu0 0.0
    %1603 = vmatprep.subr.mxu0 0.0
    %1604 = vmatpush1.msra.mxu0 0.0
    %1605 = vmatprep.subr.mxu0 0.0
    %1606 = vmatpush1.msra.mxu0 0.0
    %1607 = vmatprep.mubr.f32.mxu0 0.0
    %1608 = vmatmul.mubr.f32.gmra.mrb[0].mxu0 %v1541
    %v1609 = vpop.f32.mrb[0].mxu0
    %v1610 = vadd.f32 0.0, %v1609
    %v1611 = vpop.f32.mrb[0].mxu0
    %1612 = vdwg.mxu0
    %v1614 = vrot.slane %v1610, 5
    %v1616 = vadd.f32 %v1228, %v1614
    %v1617 = vxor.u32 %v1616, 2147483648
    %v1618 = vmul.f32 %v1617, 1.442695
    %v1619 = vpow.pop %v1618
    %v1620 = vadd.f32 %v1619, 1.0
    %v1621 = vrcp.pop %v1620
    %v1622 = vmul.f32 1.0, %v1621
    %v1623 = vtanh.pop %v1616
    %v1625 = vrot.slane %v1530, 7
    %v1627 = vmul.f32 %v1622, %v1625
    %1629 = vrot.lane.b32.xlu0 %v1623, 64
    %v1630 = vpop.permute.xlu0 %1629
    %v1632 = vmul.f32 %v1622, %v1630
    %1634 = vrot.lane.b32.xlu0 %v1632, 32
    %v1635 = vpop.permute.xlu0 %1634
    %v1637 = vadd.f32 %v1627, %v1635
    %v1638 = vtanh.pop %v1637
    %1640 = vrot.lane.b32.xlu0 %v1638, 64
    %v1641 = vpop.permute.xlu0 %1640
    %v1643 = vmul.f32 %v1622, %v1641
    %v1644 = vld [vmem:[#allocation14] sm:$0xff]
    %v1645 = vld [vmem:[#allocation14 + $0x8] sm:$0xff]
    %v1646 = vld [vmem:[#allocation14 + $0x10] sm:$0xff]
    %v1647 = vld [vmem:[#allocation14 + $0x18] sm:$0xff]
    %v1648 = vld [vmem:[#allocation15] sm:$0x1]
    %v1650 = vrot.slane %v1643, 3
    %1651 = vrot.lane.b32.xlu0 %v1650, 32
    %v1652 = vpop.permute.xlu0 %1651
    %v1653 = vsel %vm284, %v1652, 0
    %1655 = vmatprep.subr.mxu0 0.0
    %1656 = vmatpush1.msra.mxu0 %v1644
    %1657 = vmatprep.subr.mxu0 0.0
    %1658 = vmatpush1.msra.mxu0 %v1645
    %1659 = vmatprep.subr.mxu0 0.0
    %1660 = vmatpush1.msra.mxu0 %v1646
    %1661 = vmatprep.subr.mxu0 0.0
    %1662 = vmatpush1.msra.mxu0 %v1647
    %1663 = vmatprep.subr.mxu0 0.0
    %1664 = vmatpush1.msra.mxu0 0.0
    %1665 = vmatprep.subr.mxu0 0.0
    %1666 = vmatpush1.msra.mxu0 0.0
    %1667 = vmatprep.subr.mxu0 0.0
    %1668 = vmatpush1.msra.mxu0 0.0
    %1669 = vmatprep.subr.mxu0 0.0
    %1670 = vmatpush1.msra.mxu0 0.0
    %1671 = vmatprep.subr.mxu0 0.0
    %1672 = vmatpush1.msra.mxu0 0.0
    %1673 = vmatprep.subr.mxu0 0.0
    %1674 = vmatpush1.msra.mxu0 0.0
    %1675 = vmatprep.subr.mxu0 0.0
    %1676 = vmatpush1.msra.mxu0 0.0
    %1677 = vmatprep.subr.mxu0 0.0
    %1678 = vmatpush1.msra.mxu0 0.0
    %1679 = vmatprep.subr.mxu0 0.0
    %1680 = vmatpush1.msra.mxu0 0.0
    %1681 = vmatprep.subr.mxu0 0.0
    %1682 = vmatpush1.msra.mxu0 0.0
    %1683 = vmatprep.subr.mxu0 0.0
    %1684 = vmatpush1.msra.mxu0 0.0
    %1685 = vmatprep.subr.mxu0 0.0
    %1686 = vmatpush1.msra.mxu0 0.0
    %1687 = vmatprep.subr.mxu0 0.0
    %1688 = vmatpush1.msra.mxu0 0.0
    %1689 = vmatprep.subr.mxu0 0.0
    %1690 = vmatpush1.msra.mxu0 0.0
    %1691 = vmatprep.subr.mxu0 0.0
    %1692 = vmatpush1.msra.mxu0 0.0
    %1693 = vmatprep.subr.mxu0 0.0
    %1694 = vmatpush1.msra.mxu0 0.0
    %1695 = vmatprep.subr.mxu0 0.0
    %1696 = vmatpush1.msra.mxu0 0.0
    %1697 = vmatprep.subr.mxu0 0.0
    %1698 = vmatpush1.msra.mxu0 0.0
    %1699 = vmatprep.subr.mxu0 0.0
    %1700 = vmatpush1.msra.mxu0 0.0
    %1701 = vmatprep.subr.mxu0 0.0
    %1702 = vmatpush1.msra.mxu0 0.0
    %1703 = vmatprep.subr.mxu0 0.0
    %1704 = vmatpush1.msra.mxu0 0.0
    %1705 = vmatprep.subr.mxu0 0.0
    %1706 = vmatpush1.msra.mxu0 0.0
    %1707 = vmatprep.subr.mxu0 0.0
    %1708 = vmatpush1.msra.mxu0 0.0
    %1709 = vmatprep.subr.mxu0 0.0
    %1710 = vmatpush1.msra.mxu0 0.0
    %1711 = vmatprep.subr.mxu0 0.0
    %1712 = vmatpush1.msra.mxu0 0.0
    %1713 = vmatprep.subr.mxu0 0.0
    %1714 = vmatpush1.msra.mxu0 0.0
    %1715 = vmatprep.subr.mxu0 0.0
    %1716 = vmatpush1.msra.mxu0 0.0
    %1717 = vmatprep.subr.mxu0 0.0
    %1718 = vmatpush1.msra.mxu0 0.0
    %1719 = vmatprep.mubr.f32.mxu0 0.0
    %1720 = vmatmul.mubr.f32.gmra.mrb[0].mxu0 %v1653
    %v1721 = vpop.f32.mrb[0].mxu0
    %v1722 = vadd.f32 %v1648, %v1721
    %v1723 = vpop.f32.mrb[0].mxu0
    %1724 = vdwg.mxu0
    %v1725 = vld [vmem:[#allocation17] sm:$0x3f]
    %v1726 = vld [vmem:[#allocation18] sm:$0xff]
    %v1727 = vld [vmem:[#allocation18 + $0x8] sm:$0x3]
    %v1728 = vld [vmem:[#allocation20] sm:$0x1]
    %v1730 = vlaneseq
    %v1731 = vshrl.u32 %v1730, 7
    %v1732 = vsub.s32 0, %v1731
    %v1733 = vrot.slane %v1728, %v1732
    %vm1735 = vcmask 80896
    %v1737 = vsel %vm1735, %v1725, 0
    %v1740 = vsel %vm1133, %v1727, 0
    %1742 = vmatprep.subr.mxu0 0.0
    %1743 = vmatpush1.msra.mxu0 %v1726
    %1744 = vmatprep.subr.mxu0 0.0
    %1745 = vmatpush1.msra.mxu0 %v1740
    %1746 = vmatprep.subr.mxu0 0.0
    %1747 = vmatpush1.msra.mxu0 0.0
    %1748 = vmatprep.subr.mxu0 0.0
    %1749 = vmatpush1.msra.mxu0 0.0
    %1750 = vmatprep.subr.mxu0 0.0
    %1751 = vmatpush1.msra.mxu0 0.0
    %1752 = vmatprep.subr.mxu0 0.0
    %1753 = vmatpush1.msra.mxu0 0.0
    %1754 = vmatprep.subr.mxu0 0.0
    %1755 = vmatpush1.msra.mxu0 0.0
    %1756 = vmatprep.subr.mxu0 0.0
    %1757 = vmatpush1.msra.mxu0 0.0
    %1758 = vmatprep.subr.mxu0 0.0
    %1759 = vmatpush1.msra.mxu0 0.0
    %1760 = vmatprep.subr.mxu0 0.0
    %1761 = vmatpush1.msra.mxu0 0.0
    %1762 = vmatprep.subr.mxu0 0.0
    %1763 = vmatpush1.msra.mxu0 0.0
    %1764 = vmatprep.subr.mxu0 0.0
    %1765 = vmatpush1.msra.mxu0 0.0
    %1766 = vmatprep.subr.mxu0 0.0
    %1767 = vmatpush1.msra.mxu0 0.0
    %1768 = vmatprep.subr.mxu0 0.0
    %1769 = vmatpush1.msra.mxu0 0.0
    %1770 = vmatprep.subr.mxu0 0.0
    %1771 = vmatpush1.msra.mxu0 0.0
    %1772 = vmatprep.subr.mxu0 0.0
    %1773 = vmatpush1.msra.mxu0 0.0
    %1774 = vmatprep.subr.mxu0 0.0
    %1775 = vmatpush1.msra.mxu0 0.0
    %1776 = vmatprep.subr.mxu0 0.0
    %1777 = vmatpush1.msra.mxu0 0.0
    %1778 = vmatprep.subr.mxu0 0.0
    %1779 = vmatpush1.msra.mxu0 0.0
    %1780 = vmatprep.subr.mxu0 0.0
    %1781 = vmatpush1.msra.mxu0 0.0
    %1782 = vmatprep.subr.mxu0 0.0
    %1783 = vmatpush1.msra.mxu0 0.0
    %1784 = vmatprep.subr.mxu0 0.0
    %1785 = vmatpush1.msra.mxu0 0.0
    %1786 = vmatprep.subr.mxu0 0.0
    %1787 = vmatpush1.msra.mxu0 0.0
    %1788 = vmatprep.subr.mxu0 0.0
    %1789 = vmatpush1.msra.mxu0 0.0
    %1790 = vmatprep.subr.mxu0 0.0
    %1791 = vmatpush1.msra.mxu0 0.0
    %1792 = vmatprep.subr.mxu0 0.0
    %1793 = vmatpush1.msra.mxu0 0.0
    %1794 = vmatprep.subr.mxu0 0.0
    %1795 = vmatpush1.msra.mxu0 0.0
    %1796 = vmatprep.subr.mxu0 0.0
    %1797 = vmatpush1.msra.mxu0 0.0
    %1798 = vmatprep.subr.mxu0 0.0
    %1799 = vmatpush1.msra.mxu0 0.0
    %1800 = vmatprep.subr.mxu0 0.0
    %1801 = vmatpush1.msra.mxu0 0.0
    %1802 = vmatprep.subr.mxu0 0.0
    %1803 = vmatpush1.msra.mxu0 0.0
    %1804 = vmatprep.subr.mxu0 0.0
    %1805 = vmatpush1.msra.mxu0 0.0
    %1806 = vmatprep.mubr.f32.mxu0 0.0
    %1807 = vmatmul.mubr.f32.gmra.mrb[0].mxu0 %v1737
    %v1808 = vpop.f32.mrb[0].mxu0
    %v1809 = vadd.f32 %v1733, %v1808
    %v1810 = vpop.f32.mrb[0].mxu0
    %1811 = vdwg.mxu0
    %v1813 = vrot.slane %v1722, 4
    %1814 = vrot.lane.b32.xlu0 %v1813, 96
    %v1815 = vpop.permute.xlu0 %1814
    %v1818 = vrot.slane %v1809, 3
    %1819 = vrot.lane.b32.xlu0 %v1818, 96
    %v1820 = vpop.permute.xlu0 %1819
    %v1822 = vsel %vm1137, %v1202, %v1815
    %v1823 = vsel %vm1139, %v1822, %v1820
    %1825 = vrot.lane.b32.xlu0 %v1823, 32
    %v1826 = vpop.permute.xlu0 %1825
    %1827 = vrot.lane.b32.xlu0 %v1820, 32
    %v1828 = vpop.permute.xlu0 %1827
    %1831 = vst.msk [vmem:[#allocation22] sm:$0xff] %vm284, %v1826
    %vm1832 = vcmask 256000
    %1833 = vst.msk [vmem:[#allocation22 + $0x8] sm:$0x7] %vm1832, %v1828
    // Predicated region
    $region106: #{pdf_organizer_forward.1} parent=1 // pred_check
      _
    $region107: #{pdf_organizer_forward.1} parent=1 // pred_check_branch
      %1835 = sbr.rel (0) target = $region109
    $region108: #{pdf_organizer_forward.1} parent=1 // pred_region
      %s1837 = ssub.s32 256, 256
      %1838 = vsyncadd [#allocation4], %s1837
      %s1839 = sshll.u32 [#allocation22], 4
      %s1840 = int_to_ptr.vmem [resolvable:$true] %s1839
      %1845 = dma.vmem_to_hbm [thread:$0]  %s1840, 256, %s14, [#allocation4], 128, 128, 8
    $region109: #{pdf_organizer_forward.1} parent=1 // pred_fallthru
      _
    // Predicated region
    $region110: #{pdf_organizer_forward.1} parent=1 // pred_check
      _
    $region111: #{pdf_organizer_forward.1} parent=1 // pred_check_branch
      %1847 = sbr.rel (0) target = $region113
    $region112: #{pdf_organizer_forward.1} parent=1 // pred_region
      %1848 = dma.done [#allocation4], 256
    $region113: #{pdf_organizer_forward.1} parent=1 // pred_fallthru
      _
    %1849 = vsyncpa [#allocation3], 1
    %1850 = vsyncpa [#allocation7], 1
    %1851 = vsyncpa [#allocation10], 1
    %1852 = vsyncpa [#allocation13], 1
    %1853 = vsyncpa [#allocation16], 1
    %1854 = vsyncpa [#allocation19], 1
    %1855 = vsyncpa [#allocation4], 1
    %1856 = vsyncpa [#allocation5], 1

</llo_original>
